<compile_context>
chip_gen: v7x
topology: tpu7x:2x2x1
jax: 0.10.0
libtpu: 0.0.40
codegen_flags: <defaults>
</compile_context>

<pallas_src>
import functools

import jax
import jax.numpy as jnp
from jax.experimental import pallas as pl
from jax.experimental.pallas import tpu as pltpu


def _relu_conv1x1_bn_kernel(x_ref, w_ref, g_ref, b_ref, o_ref, *, m_true, eps):
    # x_ref: (Cin, M)   f32  -- full spatial slab (M = N*H*W), resident across the grid
    # w_ref: (Tco, Cin) bf16 -- 1x1 conv weight tile (kernel dims squeezed)
    # g_ref, b_ref: (Tco, 1) f32 -- BN gamma / beta tile
    # o_ref: (Tco, M)   f32
    h = jnp.maximum(x_ref[...], 0.0).astype(jnp.bfloat16)        # ReLU fused with bf16 cast (VPU)

    # 1x1 conv in native layout: (Tco, Cin) @ (Cin, M) -> (Tco, M), f32 accumulate on MXU.
    y = jnp.dot(w_ref[...], h, preferred_element_type=jnp.float32)

    # Train-mode batch statistics (biased variance) per output channel.
    inv_m = 1.0 / m_true
    ones = jnp.ones((y.shape[1], 1), dtype=jnp.float32)
    s1 = jnp.dot(y, ones, preferred_element_type=jnp.float32)    # row sums on the idle MXU
    s2 = jnp.sum(y * y, axis=1, keepdims=True)                   # fused square + reduce
    mean = s1 * inv_m
    var = jnp.maximum(s2 * inv_m - mean * mean, 0.0)             # clamp guards cancellation
    inv_std = jax.lax.rsqrt(var + eps)                           # EUP (free slot)

    scale = g_ref[...] * inv_std                                 # (Tco, 1)
    shift = b_ref[...] - mean * scale                            # (Tco, 1)
    o_ref[...] = y * scale + shift                               # one fused VPU pass


def relu_conv1x1_bn(x_nchw, conv_weight, gamma, beta, *, eps=1e-5, cout_blocks=2):
    """x_nchw: (N, Cin, H, W); conv_weight: (Cout, Cin); gamma/beta: (Cout,).
    Returns (N, Cout, H, W)."""
    N, Cin, H, W = x_nchw.shape
    Cout = conv_weight.shape[0]
    M = N * H * W

    if N == 1:
        x2d = x_nchw.reshape(Cin, M)                             # free view, no transpose
    else:
        x2d = jnp.transpose(x_nchw, (1, 0, 2, 3)).reshape(Cin, M)

    # Grid over output channels (BN stats are per-channel -> independent blocks).
    if Cout % cout_blocks != 0 or (Cout // cout_blocks) % 8 != 0:
        cout_blocks = 1
    Tco = Cout // cout_blocks

    w_bf16 = conv_weight.astype(jnp.bfloat16)                    # halve the dominant DMA
    g2d = gamma.reshape(Cout, 1).astype(jnp.float32)
    b2d = beta.reshape(Cout, 1).astype(jnp.float32)

    kernel = functools.partial(_relu_conv1x1_bn_kernel, m_true=float(M), eps=eps)

    out2d = pl.pallas_call(
        kernel,
        out_shape=jax.ShapeDtypeStruct((Cout, M), jnp.float32),
        grid_spec=pltpu.PrefetchScalarGridSpec(
            num_scalar_prefetch=0,
            grid=(cout_blocks,),
            in_specs=[
                pl.BlockSpec((Cin, M), lambda i: (0, 0)),        # x: stays resident
                pl.BlockSpec((Tco, Cin), lambda i: (i, 0)),      # weight tile
                pl.BlockSpec((Tco, 1), lambda i: (i, 0)),        # gamma tile
                pl.BlockSpec((Tco, 1), lambda i: (i, 0)),        # beta tile
            ],
            out_specs=pl.BlockSpec((Tco, M), lambda i: (i, 0)),
        ),
        compiler_params=pltpu.CompilerParams(
            dimension_semantics=("parallel",)),
        cost_estimate=pl.CostEstimate(
            flops=2 * M * Cin * Cout,
            transcendentals=Cout,
            bytes_accessed=4 * Cin * M + 2 * Cin * Cout + 4 * Cout * M,
        ),
    )(x2d, w_bf16, g2d, b2d)

    if N == 1:
        return out2d.reshape(1, Cout, H, W)
    return jnp.transpose(out2d.reshape(Cout, N, H, W), (1, 0, 2, 3))


def _reference(x_nchw, conv_weight, gamma, beta):
    # Pure-JAX (f32) reference for a sanity check.
    h = jnp.maximum(x_nchw, 0.0)
    y = jnp.einsum('nchw,oc->nohw', h, conv_weight)
    mean = jnp.mean(y, axis=(0, 2, 3), keepdims=True)
    var = jnp.mean((y - mean) ** 2, axis=(0, 2, 3), keepdims=True)
    yhat = (y - mean) / jnp.sqrt(var + 1e-5)
    return yhat * gamma.reshape(1, -1, 1, 1) + beta.reshape(1, -1, 1, 1)


if __name__ == "__main__":
    # Shapes match the module: x104 = randn(1, 432, 14, 14); Conv2d(432, 432, 1x1)
    N, C, H, W = 1, 432, 14, 14

    key = jax.random.PRNGKey(0)
    kx, kw, kg, kb = jax.random.split(key, 4)
    x = jax.random.normal(kx, (N, C, H, W), dtype=jnp.float32)
    # Deterministic parameter init (synthetic, not a checkpoint load):
    conv_w = jax.random.normal(kw, (C, C), dtype=jnp.float32) * 0.05  # (Cout, Cin)
    gamma = 1.0 + 0.1 * jax.random.normal(kg, (C,), dtype=jnp.float32)
    beta = 0.1 * jax.random.normal(kb, (C,), dtype=jnp.float32)

    out = relu_conv1x1_bn(x, conv_w, gamma, beta)
    out = jax.block_until_ready(out)

    ref = _reference(x, conv_w, gamma, beta)
    assert out.shape == (N, C, H, W)
    # bf16 MXU operands (f32 accumulation) vs pure-f32 reference -> relaxed tolerance.
    assert jnp.allclose(out, ref, atol=2e-2, rtol=2e-2), "mismatch vs reference"

    print("KERNEL_OK")
</pallas_src>

<mosaic_0001>
module attributes {stable_mosaic.version = 11 : i64} {
  func.func @_relu_conv1x1_bn_kernel(%arg0: i32, %arg1: memref<432x196xf32, #tpu.memory_space<vmem>>, %arg2: memref<216x432xbf16, #tpu.memory_space<vmem>>, %arg3: memref<216x1xf32, #tpu.memory_space<vmem>>, %arg4: memref<216x1xf32, #tpu.memory_space<vmem>>, %arg5: memref<216x196xf32, #tpu.memory_space<vmem>>) attributes {dimension_semantics = [#tpu.dimension_semantics<parallel>], iteration_bounds = array<i64: 2>, scalar_prefetch = 0 : i64, scratch_operands = 0 : i64, tpu.core_type = #tpu.core_type<tc>, window_params = [{pipeline_mode = #tpu.pipeline_mode<synchronous>, transform_indices = @transform_0, window_bounds = array<i64: 432, 196>}, {transform_indices = @transform_1, window_bounds = array<i64: 216, 432>}, {transform_indices = @transform_2, window_bounds = array<i64: 216, 1>}, {transform_indices = @transform_3, window_bounds = array<i64: 216, 1>}, {transform_indices = @transform_4, window_bounds = array<i64: 216, 196>}]} {
    %c0 = arith.constant 0 : index
    %c0_0 = arith.constant 0 : index
    %0 = vector.load %arg1[%c0, %c0_0] : memref<432x196xf32, #tpu.memory_space<vmem>>, vector<432x196xf32>
    %cst = arith.constant 0.000000e+00 : f32
    %1 = vector.broadcast %cst : f32 to vector<432x196xf32>
    %2 = arith.maximumf %0, %1 : vector<432x196xf32>
    %3 = arith.truncf %2 : vector<432x196xf32> to vector<432x196xbf16>
    %c0_1 = arith.constant 0 : index
    %c0_2 = arith.constant 0 : index
    %4 = vector.load %arg2[%c0_1, %c0_2] : memref<216x432xbf16, #tpu.memory_space<vmem>>, vector<216x432xbf16>
    %cst_3 = arith.constant dense<0.000000e+00> : vector<216x196xf32>
    %5 = tpu.matmul %4, %3, %cst_3 {dimension_numbers = #tpu.dot_dimension_numbers<[1], [0], [0], [1], [0, 0, 1, 1], [], []>} : vector<216x432xbf16>, vector<432x196xbf16>, vector<216x196xf32> -> vector<216x196xf32>
    %cst_4 = arith.constant 1.000000e+00 : f32
    %6 = vector.broadcast %cst_4 : f32 to vector<196x1xf32>
    %cst_5 = arith.constant dense<0.000000e+00> : vector<216x1xf32>
    %7 = tpu.matmul %5, %6, %cst_5 {dimension_numbers = #tpu.dot_dimension_numbers<[1], [0], [0], [1], [0, 0, 1, 1], [], []>} : vector<216x196xf32>, vector<196x1xf32>, vector<216x1xf32> -> vector<216x1xf32>
    %8 = arith.mulf %5, %5 : vector<216x196xf32>
    %cst_6 = arith.constant dense<0.000000e+00> : vector<216xf32>
    %9 = vector.multi_reduction <add>, %8, %cst_6 [1] : vector<216x196xf32> to vector<216xf32>
    %10 = vector.shape_cast %9 : vector<216xf32> to vector<216x1xf32>
    %cst_7 = arith.constant 0.00510204071 : f32
    %11 = vector.broadcast %cst_7 : f32 to vector<216x1xf32>
    %12 = arith.mulf %7, %11 : vector<216x1xf32>
    %cst_8 = arith.constant 0.00510204071 : f32
    %13 = vector.broadcast %cst_8 : f32 to vector<216x1xf32>
    %14 = arith.mulf %10, %13 : vector<216x1xf32>
    %15 = arith.mulf %12, %12 : vector<216x1xf32>
    %16 = arith.subf %14, %15 : vector<216x1xf32>
    %cst_9 = arith.constant 0.000000e+00 : f32
    %17 = vector.broadcast %cst_9 : f32 to vector<216x1xf32>
    %18 = arith.maximumf %16, %17 : vector<216x1xf32>
    %cst_10 = arith.constant 9.99999974E-6 : f32
    %19 = vector.broadcast %cst_10 : f32 to vector<216x1xf32>
    %20 = arith.addf %18, %19 : vector<216x1xf32>
    %21 = math.rsqrt %20 : vector<216x1xf32>
    %c0_11 = arith.constant 0 : index
    %c0_12 = arith.constant 0 : index
    %22 = vector.load %arg3[%c0_11, %c0_12] : memref<216x1xf32, #tpu.memory_space<vmem>>, vector<216x1xf32>
    %23 = arith.mulf %22, %21 : vector<216x1xf32>
    %c0_13 = arith.constant 0 : index
    %c0_14 = arith.constant 0 : index
    %24 = vector.load %arg4[%c0_13, %c0_14] : memref<216x1xf32, #tpu.memory_space<vmem>>, vector<216x1xf32>
    %25 = arith.mulf %12, %23 : vector<216x1xf32>
    %26 = arith.subf %24, %25 : vector<216x1xf32>
    %27 = vector.broadcast %23 : vector<216x1xf32> to vector<216x196xf32>
    %28 = arith.mulf %5, %27 : vector<216x196xf32>
    %29 = vector.broadcast %26 : vector<216x1xf32> to vector<216x196xf32>
    %30 = arith.addf %28, %29 : vector<216x196xf32>
    %c0_15 = arith.constant 0 : index
    %c0_16 = arith.constant 0 : index
    %31 = vector.load %arg5[%c0_15, %c0_16] : memref<216x196xf32, #tpu.memory_space<vmem>>, vector<216x196xf32>
    tpu.vector_store %arg5[%c0_15, %c0_16], %30 {strides = array<i32>} : memref<216x196xf32, #tpu.memory_space<vmem>>, vector<216x196xf32>,
    return
  }
  func.func @transform_0(%arg0: i32) -> (i32, i32) {
    %c0_i32 = arith.constant 0 : i32
    %c0_i32_0 = arith.constant 0 : i32
    %c0_i32_1 = arith.constant 0 : i32
    return %c0_i32, %c0_i32_0 : i32, i32
  }
  func.func @transform_1(%arg0: i32) -> (i32, i32) {
    %c0_i32 = arith.constant 0 : i32
    %c0_i32_0 = arith.constant 0 : i32
    return %arg0, %c0_i32 : i32, i32
  }
  func.func @transform_2(%arg0: i32) -> (i32, i32) {
    %c0_i32 = arith.constant 0 : i32
    %c0_i32_0 = arith.constant 0 : i32
    return %arg0, %c0_i32 : i32, i32
  }
  func.func @transform_3(%arg0: i32) -> (i32, i32) {
    %c0_i32 = arith.constant 0 : i32
    %c0_i32_0 = arith.constant 0 : i32
    return %arg0, %c0_i32 : i32, i32
  }
  func.func @transform_4(%arg0: i32) -> (i32, i32) {
    %c0_i32 = arith.constant 0 : i32
    %c0_i32_0 = arith.constant 0 : i32
    return %arg0, %c0_i32 : i32, i32
  }
}

</mosaic_0001>

<llo_original>
// kernel: tpu_custom_call.1
$region0: #{tpu_custom_call.1}
  #allocation0 [shape = 'u32[]', space=smem, size = 0x4, offset = 0x4, fixed_abs, tag = 'smem constant byte address 0x4 - core index']
  #allocation1 [shape = 'u32[144,128]{1,0:T(1,128)}', space=vmem, size = 0x12000, scoped, tag = 'internal scratch']
  %s0 = inlined_call_operand.vmem [shape: f32[432,196], index: 0, kind: input, shape index: {}]
  %s1 = inlined_call_operand.vmem [shape: bf16[432,432], index: 1, kind: input, shape index: {}]
  %s2 = inlined_call_operand.vmem [shape: f32[432,1], index: 2, kind: input, shape index: {}]
  %s3 = inlined_call_operand.vmem [shape: f32[432,1], index: 3, kind: input, shape index: {}]
  %s4 = inlined_call_operand.vmem [shape: f32[432,196], index: 4, kind: output, shape index: {}]
  %s5 = sld [smem:[#allocation0]]
  $region49: #{tpu_custom_call.1} parent=0
    _
  %s7 = ssub.s32 1, %s5
  %s8 = scalar_select 0, %s7, %s5
  loop: start=0, step=1, limit=4
  $region2: #{tpu_custom_call.1} parent=0 // loop_pre_header
    _
  $region3: #{tpu_custom_call.1} parent=0 // loop_header
    %s10 = sphi 0, %s14
    %p11 = scmp.ge.s32.totalorder %s10, 4
    %s18 = sphi 0, %s18
    %s20 = sphi 0, %s18
    %s21 = sphi 0, %s20
    %s35 = sphi 0, %s21
    %s41 = sphi 0, %s43
    %s44 = sphi 0, %s41
    %s45 = sphi 0, %s44
    %s61 = sphi 0, %s45
    %s67 = sphi 0, %s69
    %s70 = sphi 0, %s67
    %s71 = sphi 0, %s70
    %s87 = sphi 0, %s71
    %s93 = sphi 0, %s95
    %s96 = sphi 0, %s93
    %s97 = sphi 0, %s96
    %s113 = sphi 0, %s97
    %s119 = sphi 0, %s121
    %s122 = sphi 0, %s119
    %s123 = sphi 0, %s122
    %s139 = sphi 0, %s123
  $region4: #{tpu_custom_call.1} parent=0 // loop_header_branch
    %13 = sbr.rel (%p11) target = $region8
  $region5: #{tpu_custom_call.1} parent=0 // loop_body
    %s15 = ssub.s32 %s10, 1
    %s16 = ssub.s32 %s10, 2
    %s17 = sadd.s32 %s10, 1
    %s19 = sadd.s32 %s18, 1
    %p22 = scmp.eq.s32.totalorder %s10, 1
    %p23 = scmp.ne.s32.totalorder %s18, %s20
    %p24 = scmp.eq.s32.totalorder %s10, 0
    %p25 = por %p23, %p24
    %p26 = scmp.ne.s32.totalorder %s18, %s20
    %p27 = scmp.eq.s32.totalorder %s15, 1
    %p28 = por %p26, %p27
    %p29 = scmp.ne.s32.totalorder %s20, %s21
    %p30 = scmp.eq.s32.totalorder %s15, 0
    %p31 = por %p29, %p30
    %p32 = scmp.ne.s32.totalorder %s20, %s21
    %p33 = scmp.eq.s32.totalorder %s16, 1
    %p34 = por %p32, %p33
    %p36 = scmp.ne.s32.totalorder %s21, %s35
    %p37 = scmp.eq.s32.totalorder %s16, 0
    %p38 = por %p36, %p37
    %s39 = ssub.s32 %s10, %s17
    %p40 = scmp.eq.s32.totalorder %s39, 0
    %s42 = sadd.s32 %s41, 1
    %s43 = scalar_select %p40, %s41, %s42
    %p46 = pneg %p40
    %p47 = scmp.eq.s32.totalorder %s10, 1
    %p48 = por %p46, %p47
    %p49 = scmp.ne.s32.totalorder %s41, %s44
    %p50 = scmp.eq.s32.totalorder %s10, 0
    %p51 = por %p49, %p50
    %p52 = scmp.ne.s32.totalorder %s41, %s44
    %p53 = scmp.eq.s32.totalorder %s15, 1
    %p54 = por %p52, %p53
    %p55 = scmp.ne.s32.totalorder %s44, %s45
    %p56 = scmp.eq.s32.totalorder %s15, 0
    %p57 = por %p55, %p56
    %p58 = scmp.ne.s32.totalorder %s44, %s45
    %p59 = scmp.eq.s32.totalorder %s16, 1
    %p60 = por %p58, %p59
    %p62 = scmp.ne.s32.totalorder %s45, %s61
    %p63 = scmp.eq.s32.totalorder %s16, 0
    %p64 = por %p62, %p63
    %s65 = ssub.s32 %s10, %s17
    %p66 = scmp.eq.s32.totalorder %s65, 0
    %s68 = sadd.s32 %s67, 1
    %s69 = scalar_select %p66, %s67, %s68
    %p72 = pneg %p66
    %p73 = scmp.eq.s32.totalorder %s10, 1
    %p74 = por %p72, %p73
    %p75 = scmp.ne.s32.totalorder %s67, %s70
    %p76 = scmp.eq.s32.totalorder %s10, 0
    %p77 = por %p75, %p76
    %p78 = scmp.ne.s32.totalorder %s67, %s70
    %p79 = scmp.eq.s32.totalorder %s15, 1
    %p80 = por %p78, %p79
    %p81 = scmp.ne.s32.totalorder %s70, %s71
    %p82 = scmp.eq.s32.totalorder %s15, 0
    %p83 = por %p81, %p82
    %p84 = scmp.ne.s32.totalorder %s70, %s71
    %p85 = scmp.eq.s32.totalorder %s16, 1
    %p86 = por %p84, %p85
    %p88 = scmp.ne.s32.totalorder %s71, %s87
    %p89 = scmp.eq.s32.totalorder %s16, 0
    %p90 = por %p88, %p89
    %s91 = ssub.s32 %s10, %s17
    %p92 = scmp.eq.s32.totalorder %s91, 0
    %s94 = sadd.s32 %s93, 1
    %s95 = scalar_select %p92, %s93, %s94
    %p98 = pneg %p92
    %p99 = scmp.eq.s32.totalorder %s10, 1
    %p100 = por %p98, %p99
    %p101 = scmp.ne.s32.totalorder %s93, %s96
    %p102 = scmp.eq.s32.totalorder %s10, 0
    %p103 = por %p101, %p102
    %p104 = scmp.ne.s32.totalorder %s93, %s96
    %p105 = scmp.eq.s32.totalorder %s15, 1
    %p106 = por %p104, %p105
    %p107 = scmp.ne.s32.totalorder %s96, %s97
    %p108 = scmp.eq.s32.totalorder %s15, 0
    %p109 = por %p107, %p108
    %p110 = scmp.ne.s32.totalorder %s96, %s97
    %p111 = scmp.eq.s32.totalorder %s16, 1
    %p112 = por %p110, %p111
    %p114 = scmp.ne.s32.totalorder %s97, %s113
    %p115 = scmp.eq.s32.totalorder %s16, 0
    %p116 = por %p114, %p115
    %s117 = ssub.s32 %s10, %s17
    %p118 = scmp.eq.s32.totalorder %s117, 0
    %s120 = sadd.s32 %s119, 1
    %s121 = scalar_select %p118, %s119, %s120
    %p124 = pneg %p118
    %p125 = scmp.eq.s32.totalorder %s10, 1
    %p126 = por %p124, %p125
    %p127 = scmp.ne.s32.totalorder %s119, %s122
    %p128 = scmp.eq.s32.totalorder %s10, 0
    %p129 = por %p127, %p128
    %p130 = scmp.ne.s32.totalorder %s119, %s122
    %p131 = scmp.eq.s32.totalorder %s15, 1
    %p132 = por %p130, %p131
    %p133 = scmp.ne.s32.totalorder %s122, %s123
    %p134 = scmp.eq.s32.totalorder %s15, 0
    %p135 = por %p133, %p134
    %p136 = scmp.ne.s32.totalorder %s122, %s123
    %p137 = scmp.eq.s32.totalorder %s16, 1
    %p138 = por %p136, %p137
    %p140 = scmp.ne.s32.totalorder %s123, %s139
    %p141 = scmp.eq.s32.totalorder %s16, 0
    %p142 = por %p140, %p141
    %p143 = scmp.le.s32.totalorder 1, %s10
    %p144 = scmp.lt.s32.totalorder %s10, 3
    %p145 = pnand %p143, %p144
    %p146 = pneg %p145
    // Predicated region
    $region9: #{tpu_custom_call.1} parent=5 // pred_check
      _
    $region10: #{tpu_custom_call.1} parent=5 // pred_check_branch
      %148 = sbr.rel (%p145) target = $region12
    $region11: #{tpu_custom_call.1} parent=5 // pred_region
      %s149 = ssub.s32 %s10, 1
      // Predicated region
      $region13: #{tpu_custom_call.1} parent=11 // pred_check
        %p150 = pneg %p31
      $region14: #{tpu_custom_call.1} parent=11 // pred_check_branch
        %152 = sbr.rel (%p150) target = $region16
      $region15: #{tpu_custom_call.1} parent=11 // pred_region
        _
      $region16: #{tpu_custom_call.1} parent=11 // pred_fallthru
        _
    $region12: #{tpu_custom_call.1} parent=5 // pred_fallthru
      _
    %p153 = scmp.lt.s32.totalorder %s10, 2
    // Predicated region
    $region17: #{tpu_custom_call.1} parent=5 // pred_check
      %p154 = pneg %p153
    $region18: #{tpu_custom_call.1} parent=5 // pred_check_branch
      %156 = sbr.rel (%p154) target = $region20
    $region19: #{tpu_custom_call.1} parent=5 // pred_region
      // Predicated region
      $region21: #{tpu_custom_call.1} parent=19 // pred_check
        %p157 = pneg %p51
      $region22: #{tpu_custom_call.1} parent=19 // pred_check_branch
        %159 = sbr.rel (%p157) target = $region24
      $region23: #{tpu_custom_call.1} parent=19 // pred_region
        %s160 = smul.u32 27, %s10
        %p161 = scmp.lt.s32.totalorder %s160, 53
        %s162 = scalar_select %p161, %s160, 53
        %s163 = smul.addr %s162, 4
        %s164 = smul.addr %s163, 4
        %s165 = scalar_lea.vmem %s1, %s164
        %s166 = smul.u32 27, %s10
      $region24: #{tpu_custom_call.1} parent=19 // pred_fallthru
        _
      // Predicated region
      $region25: #{tpu_custom_call.1} parent=19 // pred_check
        %p167 = pneg %p77
      $region26: #{tpu_custom_call.1} parent=19 // pred_check_branch
        %169 = sbr.rel (%p167) target = $region28
      $region27: #{tpu_custom_call.1} parent=19 // pred_region
        %s170 = smul.u32 27, %s10
        %p171 = scmp.lt.s32.totalorder %s170, 53
        %s172 = scalar_select %p171, %s170, 53
        %s173 = smul.addr %s172, 8
        %s174 = scalar_lea.vmem %s2, %s173
        %s175 = smul.u32 27, %s10
      $region28: #{tpu_custom_call.1} parent=19 // pred_fallthru
        _
      // Predicated region
      $region29: #{tpu_custom_call.1} parent=19 // pred_check
        %p176 = pneg %p103
      $region30: #{tpu_custom_call.1} parent=19 // pred_check_branch
        %178 = sbr.rel (%p176) target = $region32
      $region31: #{tpu_custom_call.1} parent=19 // pred_region
        %s179 = smul.u32 27, %s10
        %p180 = scmp.lt.s32.totalorder %s179, 53
        %s181 = scalar_select %p180, %s179, 53
        %s182 = smul.addr %s181, 8
        %s183 = scalar_lea.vmem %s3, %s182
        %s184 = smul.u32 27, %s10
      $region32: #{tpu_custom_call.1} parent=19 // pred_fallthru
        _
    $region20: #{tpu_custom_call.1} parent=5 // pred_fallthru
      _
    %p185 = scmp.le.s32.totalorder 1, %s10
    %p186 = scmp.lt.s32.totalorder %s10, 3
    %p187 = pnand %p185, %p186
    %p188 = pneg %p187
    // Predicated region
    $region33: #{tpu_custom_call.1} parent=5 // pred_check
      _
    $region34: #{tpu_custom_call.1} parent=5 // pred_check_branch
      %190 = sbr.rel (%p187) target = $region36
    $region35: #{tpu_custom_call.1} parent=5 // pred_region
      %s191 = ssub.s32 %s10, 1
      %p192 = pneg %p31
      %p193 = pneg %p28
      %s194 = smul.u32 27, %s15
      %p195 = scmp.lt.s32.totalorder %s194, 53
      %s196 = scalar_select %p195, %s194, 53
      %s197 = smul.addr %s196, 4
      %s198 = smul.addr %s197, 4
      %s199 = scalar_lea.vmem %s1, %s198
      %p200 = pneg %p57
      %p201 = pneg %p54
      %s202 = smul.u32 27, %s15
      %p203 = scmp.lt.s32.totalorder %s202, 53
      %s204 = scalar_select %p203, %s202, 53
      %s205 = smul.addr %s204, 8
      %s206 = scalar_lea.vmem %s2, %s205
      %p207 = pneg %p83
      %p208 = pneg %p80
      %s209 = smul.u32 27, %s15
      %p210 = scmp.lt.s32.totalorder %s209, 53
      %s211 = scalar_select %p210, %s209, 53
      %s212 = smul.addr %s211, 8
      %s213 = scalar_lea.vmem %s3, %s212
      %p214 = pneg %p109
      %p215 = pneg %p106
      %p216 = pneg %p135
      %p217 = pneg %p132
      %s218 = smul.u32 27, %s15
      %p219 = scmp.lt.s32.totalorder %s218, 53
      %s220 = scalar_select %p219, %s218, 53
      %s221 = smul.addr %s220, 2
      %s222 = smul.addr %s221, 8
      %s223 = scalar_lea.vmem %s4, %s222
      %s224 = smul.u32 27, %s15
      %p225 = scmp.lt.s32.totalorder %s224, 53
      %s226 = scalar_select %p225, %s224, 53
      %s227 = smul.addr %s226, 4
      %s228 = smul.addr %s227, 4
      %s229 = scalar_lea.vmem %s1, %s228
      %s230 = smul.u32 27, %s15
      %s231 = smul.u32 27, %s15
      %p232 = scmp.lt.s32.totalorder %s231, 53
      %s233 = scalar_select %p232, %s231, 53
      %s234 = smul.addr %s233, 8
      %s235 = scalar_lea.vmem %s2, %s234
      %s236 = smul.u32 27, %s15
      %s237 = smul.u32 27, %s15
      %p238 = scmp.lt.s32.totalorder %s237, 53
      %s239 = scalar_select %p238, %s237, 53
      %s240 = smul.addr %s239, 8
      %s241 = scalar_lea.vmem %s3, %s240
      %s242 = smul.u32 27, %s15
      %s243 = smul.u32 27, %s15
      %p244 = scmp.lt.s32.totalorder %s243, 53
      %s245 = scalar_select %p244, %s243, 53
      %s246 = smul.addr %s245, 2
      %s247 = smul.addr %s246, 8
      %s248 = scalar_lea.vmem %s4, %s247
      %s249 = smul.u32 27, %s15
      %v251 = vld [vmem:[%s0] sm:$0xff]
      %v252 = vld [vmem:[%s0 + $0x8] sm:$0xff]
      %v253 = vld [vmem:[%s0 + $0x10] sm:$0xff]
      %v254 = vld [vmem:[%s0 + $0x18] sm:$0xff]
      %v255 = vld [vmem:[%s0 + $0x20] sm:$0xff]
      %v256 = vld [vmem:[%s0 + $0x28] sm:$0xff]
      %v257 = vld [vmem:[%s0 + $0x30] sm:$0xff]
      %v258 = vld [vmem:[%s0 + $0x38] sm:$0xff]
      %v259 = vld [vmem:[%s0 + $0x40] sm:$0xff]
      %v260 = vld [vmem:[%s0 + $0x48] sm:$0xff]
      %v261 = vld [vmem:[%s0 + $0x50] sm:$0xff]
      %v262 = vld [vmem:[%s0 + $0x58] sm:$0xff]
      %v263 = vld [vmem:[%s0 + $0x60] sm:$0xff]
      %v264 = vld [vmem:[%s0 + $0x68] sm:$0xff]
      %v265 = vld [vmem:[%s0 + $0x70] sm:$0xff]
      %v266 = vld [vmem:[%s0 + $0x78] sm:$0xff]
      %v267 = vld [vmem:[%s0 + $0x80] sm:$0xff]
      %v268 = vld [vmem:[%s0 + $0x88] sm:$0xff]
      %v269 = vld [vmem:[%s0 + $0x90] sm:$0xff]
      %v270 = vld [vmem:[%s0 + $0x98] sm:$0xff]
      %v271 = vld [vmem:[%s0 + $0xa0] sm:$0xff]
      %v272 = vld [vmem:[%s0 + $0xa8] sm:$0xff]
      %v273 = vld [vmem:[%s0 + $0xb0] sm:$0xff]
      %v274 = vld [vmem:[%s0 + $0xb8] sm:$0xff]
      %v275 = vld [vmem:[%s0 + $0xc0] sm:$0xff]
      %v276 = vld [vmem:[%s0 + $0xc8] sm:$0xff]
      %v277 = vld [vmem:[%s0 + $0xd0] sm:$0xff]
      %v278 = vld [vmem:[%s0 + $0xd8] sm:$0xff]
      %v279 = vld [vmem:[%s0 + $0xe0] sm:$0xff]
      %v280 = vld [vmem:[%s0 + $0xe8] sm:$0xff]
      %v281 = vld [vmem:[%s0 + $0xf0] sm:$0xff]
      %v282 = vld [vmem:[%s0 + $0xf8] sm:$0xff]
      %v283 = vld [vmem:[%s0 + $0x100] sm:$0xff]
      %v284 = vld [vmem:[%s0 + $0x108] sm:$0xff]
      %v285 = vld [vmem:[%s0 + $0x110] sm:$0xff]
      %v286 = vld [vmem:[%s0 + $0x118] sm:$0xff]
      %v287 = vld [vmem:[%s0 + $0x120] sm:$0xff]
      %v288 = vld [vmem:[%s0 + $0x128] sm:$0xff]
      %v289 = vld [vmem:[%s0 + $0x130] sm:$0xff]
      %v290 = vld [vmem:[%s0 + $0x138] sm:$0xff]
      %v291 = vld [vmem:[%s0 + $0x140] sm:$0xff]
      %v292 = vld [vmem:[%s0 + $0x148] sm:$0xff]
      %v293 = vld [vmem:[%s0 + $0x150] sm:$0xff]
      %v294 = vld [vmem:[%s0 + $0x158] sm:$0xff]
      %v295 = vld [vmem:[%s0 + $0x160] sm:$0xff]
      %v296 = vld [vmem:[%s0 + $0x168] sm:$0xff]
      %v297 = vld [vmem:[%s0 + $0x170] sm:$0xff]
      %v298 = vld [vmem:[%s0 + $0x178] sm:$0xff]
      %v299 = vld [vmem:[%s0 + $0x180] sm:$0xff]
      %v300 = vld [vmem:[%s0 + $0x188] sm:$0xff]
      %v301 = vld [vmem:[%s0 + $0x190] sm:$0xff]
      %v302 = vld [vmem:[%s0 + $0x198] sm:$0xff]
      %v303 = vld [vmem:[%s0 + $0x1a0] sm:$0xff]
      %v304 = vld [vmem:[%s0 + $0x1a8] sm:$0xff]
      %v305 = vld [vmem:[%s0 + $0x1b0] sm:$0xff]
      %v306 = vld [vmem:[%s0 + $0x1b8] sm:$0xff]
      %v307 = vld [vmem:[%s0 + $0x1c0] sm:$0xff]
      %v308 = vld [vmem:[%s0 + $0x1c8] sm:$0xff]
      %v309 = vld [vmem:[%s0 + $0x1d0] sm:$0xff]
      %v310 = vld [vmem:[%s0 + $0x1d8] sm:$0xff]
      %v311 = vld [vmem:[%s0 + $0x1e0] sm:$0xff]
      %v312 = vld [vmem:[%s0 + $0x1e8] sm:$0xff]
      %v313 = vld [vmem:[%s0 + $0x1f0] sm:$0xff]
      %v314 = vld [vmem:[%s0 + $0x1f8] sm:$0xff]
      %v315 = vld [vmem:[%s0 + $0x200] sm:$0xff]
      %v316 = vld [vmem:[%s0 + $0x208] sm:$0xff]
      %v317 = vld [vmem:[%s0 + $0x210] sm:$0xff]
      %v318 = vld [vmem:[%s0 + $0x218] sm:$0xff]
      %v319 = vld [vmem:[%s0 + $0x220] sm:$0xff]
      %v320 = vld [vmem:[%s0 + $0x228] sm:$0xff]
      %v321 = vld [vmem:[%s0 + $0x230] sm:$0xff]
      %v322 = vld [vmem:[%s0 + $0x238] sm:$0xff]
      %v323 = vld [vmem:[%s0 + $0x240] sm:$0xff]
      %v324 = vld [vmem:[%s0 + $0x248] sm:$0xff]
      %v325 = vld [vmem:[%s0 + $0x250] sm:$0xff]
      %v326 = vld [vmem:[%s0 + $0x258] sm:$0xff]
      %v327 = vld [vmem:[%s0 + $0x260] sm:$0xff]
      %v328 = vld [vmem:[%s0 + $0x268] sm:$0xff]
      %v329 = vld [vmem:[%s0 + $0x270] sm:$0xff]
      %v330 = vld [vmem:[%s0 + $0x278] sm:$0xff]
      %v331 = vld [vmem:[%s0 + $0x280] sm:$0xff]
      %v332 = vld [vmem:[%s0 + $0x288] sm:$0xff]
      %v333 = vld [vmem:[%s0 + $0x290] sm:$0xff]
      %v334 = vld [vmem:[%s0 + $0x298] sm:$0xff]
      %v335 = vld [vmem:[%s0 + $0x2a0] sm:$0xff]
      %v336 = vld [vmem:[%s0 + $0x2a8] sm:$0xff]
      %v337 = vld [vmem:[%s0 + $0x2b0] sm:$0xff]
      %v338 = vld [vmem:[%s0 + $0x2b8] sm:$0xff]
      %v339 = vld [vmem:[%s0 + $0x2c0] sm:$0xff]
      %v340 = vld [vmem:[%s0 + $0x2c8] sm:$0xff]
      %v341 = vld [vmem:[%s0 + $0x2d0] sm:$0xff]
      %v342 = vld [vmem:[%s0 + $0x2d8] sm:$0xff]
      %v343 = vld [vmem:[%s0 + $0x2e0] sm:$0xff]
      %v344 = vld [vmem:[%s0 + $0x2e8] sm:$0xff]
      %v345 = vld [vmem:[%s0 + $0x2f0] sm:$0xff]
      %v346 = vld [vmem:[%s0 + $0x2f8] sm:$0xff]
      %v347 = vld [vmem:[%s0 + $0x300] sm:$0xff]
      %v348 = vld [vmem:[%s0 + $0x308] sm:$0xff]
      %v349 = vld [vmem:[%s0 + $0x310] sm:$0xff]
      %v350 = vld [vmem:[%s0 + $0x318] sm:$0xff]
      %v351 = vld [vmem:[%s0 + $0x320] sm:$0xff]
      %v352 = vld [vmem:[%s0 + $0x328] sm:$0xff]
      %v353 = vld [vmem:[%s0 + $0x330] sm:$0xff]
      %v354 = vld [vmem:[%s0 + $0x338] sm:$0xff]
      %v355 = vld [vmem:[%s0 + $0x340] sm:$0xff]
      %v356 = vld [vmem:[%s0 + $0x348] sm:$0xff]
      %v357 = vld [vmem:[%s0 + $0x350] sm:$0xff]
      %v358 = vld [vmem:[%s0 + $0x358] sm:$0xff]
      %v359 = vmax.f32 %v251, 0.0
      %v360 = vmax.f32 %v252, 0.0
      %v361 = vmax.f32 %v253, 0.0
      %v362 = vmax.f32 %v254, 0.0
      %v363 = vmax.f32 %v255, 0.0
      %v364 = vmax.f32 %v256, 0.0
      %v365 = vmax.f32 %v257, 0.0
      %v366 = vmax.f32 %v258, 0.0
      %v367 = vmax.f32 %v259, 0.0
      %v368 = vmax.f32 %v260, 0.0
      %v369 = vmax.f32 %v261, 0.0
      %v370 = vmax.f32 %v262, 0.0
      %v371 = vmax.f32 %v263, 0.0
      %v372 = vmax.f32 %v264, 0.0
      %v373 = vmax.f32 %v265, 0.0
      %v374 = vmax.f32 %v266, 0.0
      %v375 = vmax.f32 %v267, 0.0
      %v376 = vmax.f32 %v268, 0.0
      %v377 = vmax.f32 %v269, 0.0
      %v378 = vmax.f32 %v270, 0.0
      %v379 = vmax.f32 %v271, 0.0
      %v380 = vmax.f32 %v272, 0.0
      %v381 = vmax.f32 %v273, 0.0
      %v382 = vmax.f32 %v274, 0.0
      %v383 = vmax.f32 %v275, 0.0
      %v384 = vmax.f32 %v276, 0.0
      %v385 = vmax.f32 %v277, 0.0
      %v386 = vmax.f32 %v278, 0.0
      %v387 = vmax.f32 %v279, 0.0
      %v388 = vmax.f32 %v280, 0.0
      %v389 = vmax.f32 %v281, 0.0
      %v390 = vmax.f32 %v282, 0.0
      %v391 = vmax.f32 %v283, 0.0
      %v392 = vmax.f32 %v284, 0.0
      %v393 = vmax.f32 %v285, 0.0
      %v394 = vmax.f32 %v286, 0.0
      %v395 = vmax.f32 %v287, 0.0
      %v396 = vmax.f32 %v288, 0.0
      %v397 = vmax.f32 %v289, 0.0
      %v398 = vmax.f32 %v290, 0.0
      %v399 = vmax.f32 %v291, 0.0
      %v400 = vmax.f32 %v292, 0.0
      %v401 = vmax.f32 %v293, 0.0
      %v402 = vmax.f32 %v294, 0.0
      %v403 = vmax.f32 %v295, 0.0
      %v404 = vmax.f32 %v296, 0.0
      %v405 = vmax.f32 %v297, 0.0
      %v406 = vmax.f32 %v298, 0.0
      %v407 = vmax.f32 %v299, 0.0
      %v408 = vmax.f32 %v300, 0.0
      %v409 = vmax.f32 %v301, 0.0
      %v410 = vmax.f32 %v302, 0.0
      %v411 = vmax.f32 %v303, 0.0
      %v412 = vmax.f32 %v304, 0.0
      %v413 = vmax.f32 %v305, 0.0
      %v414 = vmax.f32 %v306, 0.0
      %v415 = vmax.f32 %v307, 0.0
      %v416 = vmax.f32 %v308, 0.0
      %v417 = vmax.f32 %v309, 0.0
      %v418 = vmax.f32 %v310, 0.0
      %v419 = vmax.f32 %v311, 0.0
      %v420 = vmax.f32 %v312, 0.0
      %v421 = vmax.f32 %v313, 0.0
      %v422 = vmax.f32 %v314, 0.0
      %v423 = vmax.f32 %v315, 0.0
      %v424 = vmax.f32 %v316, 0.0
      %v425 = vmax.f32 %v317, 0.0
      %v426 = vmax.f32 %v318, 0.0
      %v427 = vmax.f32 %v319, 0.0
      %v428 = vmax.f32 %v320, 0.0
      %v429 = vmax.f32 %v321, 0.0
      %v430 = vmax.f32 %v322, 0.0
      %v431 = vmax.f32 %v323, 0.0
      %v432 = vmax.f32 %v324, 0.0
      %v433 = vmax.f32 %v325, 0.0
      %v434 = vmax.f32 %v326, 0.0
      %v435 = vmax.f32 %v327, 0.0
      %v436 = vmax.f32 %v328, 0.0
      %v437 = vmax.f32 %v329, 0.0
      %v438 = vmax.f32 %v330, 0.0
      %v439 = vmax.f32 %v331, 0.0
      %v440 = vmax.f32 %v332, 0.0
      %v441 = vmax.f32 %v333, 0.0
      %v442 = vmax.f32 %v334, 0.0
      %v443 = vmax.f32 %v335, 0.0
      %v444 = vmax.f32 %v336, 0.0
      %v445 = vmax.f32 %v337, 0.0
      %v446 = vmax.f32 %v338, 0.0
      %v447 = vmax.f32 %v339, 0.0
      %v448 = vmax.f32 %v340, 0.0
      %v449 = vmax.f32 %v341, 0.0
      %v450 = vmax.f32 %v342, 0.0
      %v451 = vmax.f32 %v343, 0.0
      %v452 = vmax.f32 %v344, 0.0
      %v453 = vmax.f32 %v345, 0.0
      %v454 = vmax.f32 %v346, 0.0
      %v455 = vmax.f32 %v347, 0.0
      %v456 = vmax.f32 %v348, 0.0
      %v457 = vmax.f32 %v349, 0.0
      %v458 = vmax.f32 %v350, 0.0
      %v459 = vmax.f32 %v351, 0.0
      %v460 = vmax.f32 %v352, 0.0
      %v461 = vmax.f32 %v353, 0.0
      %v462 = vmax.f32 %v354, 0.0
      %v463 = vmax.f32 %v355, 0.0
      %v464 = vmax.f32 %v356, 0.0
      %v465 = vmax.f32 %v357, 0.0
      %v466 = vmax.f32 %v358, 0.0
      %v467 = vpack.c.bf16 %v361, %v359
      %v468 = vpack.c.bf16 %v362, %v360
      %v469 = vpack.c.bf16 %v365, %v363
      %v470 = vpack.c.bf16 %v366, %v364
      %v471 = vpack.c.bf16 %v369, %v367
      %v472 = vpack.c.bf16 %v370, %v368
      %v473 = vpack.c.bf16 %v373, %v371
      %v474 = vpack.c.bf16 %v374, %v372
      %v475 = vpack.c.bf16 %v377, %v375
      %v476 = vpack.c.bf16 %v378, %v376
      %v477 = vpack.c.bf16 %v381, %v379
      %v478 = vpack.c.bf16 %v382, %v380
      %v479 = vpack.c.bf16 %v385, %v383
      %v480 = vpack.c.bf16 %v386, %v384
      %v481 = vpack.c.bf16 %v389, %v387
      %v482 = vpack.c.bf16 %v390, %v388
      %v483 = vpack.c.bf16 %v393, %v391
      %v484 = vpack.c.bf16 %v394, %v392
      %v485 = vpack.c.bf16 %v397, %v395
      %v486 = vpack.c.bf16 %v398, %v396
      %v487 = vpack.c.bf16 %v401, %v399
      %v488 = vpack.c.bf16 %v402, %v400
      %v489 = vpack.c.bf16 %v405, %v403
      %v490 = vpack.c.bf16 %v406, %v404
      %v491 = vpack.c.bf16 %v409, %v407
      %v492 = vpack.c.bf16 %v410, %v408
      %v493 = vpack.c.bf16 %v413, %v411
      %v494 = vpack.c.bf16 %v414, %v412
      %v495 = vpack.c.bf16 %v417, %v415
      %v496 = vpack.c.bf16 %v418, %v416
      %v497 = vpack.c.bf16 %v421, %v419
      %v498 = vpack.c.bf16 %v422, %v420
      %v499 = vpack.c.bf16 %v425, %v423
      %v500 = vpack.c.bf16 %v426, %v424
      %v501 = vpack.c.bf16 %v429, %v427
      %v502 = vpack.c.bf16 %v430, %v428
      %v503 = vpack.c.bf16 %v433, %v431
      %v504 = vpack.c.bf16 %v434, %v432
      %v505 = vpack.c.bf16 %v437, %v435
      %v506 = vpack.c.bf16 %v438, %v436
      %v507 = vpack.c.bf16 %v441, %v439
      %v508 = vpack.c.bf16 %v442, %v440
      %v509 = vpack.c.bf16 %v445, %v443
      %v510 = vpack.c.bf16 %v446, %v444
      %v511 = vpack.c.bf16 %v449, %v447
      %v512 = vpack.c.bf16 %v450, %v448
      %v513 = vpack.c.bf16 %v453, %v451
      %v514 = vpack.c.bf16 %v454, %v452
      %v515 = vpack.c.bf16 %v457, %v455
      %v516 = vpack.c.bf16 %v458, %v456
      %v517 = vpack.c.bf16 %v461, %v459
      %v518 = vpack.c.bf16 %v462, %v460
      %v519 = vpack.c.bf16 %v465, %v463
      %v520 = vpack.c.bf16 %v466, %v464
      %v521 = vld [vmem:[%s229] sm:$0xff]
      %v522 = vld [vmem:[%s229 + $0x8] sm:$0xff]
      %v523 = vld [vmem:[%s229 + $0x10] sm:$0xff]
      %v524 = vld [vmem:[%s229 + $0x18] sm:$0xff]
      %v525 = vld [vmem:[%s229 + $0x20] sm:$0xff]
      %v526 = vld [vmem:[%s229 + $0x28] sm:$0xff]
      %v527 = vld [vmem:[%s229 + $0x30] sm:$0xff]
      %v528 = vld [vmem:[%s229 + $0x38] sm:$0xff]
      %v529 = vld [vmem:[%s229 + $0x40] sm:$0xff]
      %v530 = vld [vmem:[%s229 + $0x48] sm:$0xff]
      %v531 = vld [vmem:[%s229 + $0x50] sm:$0xff]
      %v532 = vld [vmem:[%s229 + $0x58] sm:$0xff]
      %v533 = vld [vmem:[%s229 + $0x60] sm:$0xff]
      %v534 = vld [vmem:[%s229 + $0x68] sm:$0xff]
      %v535 = vld [vmem:[%s229 + $0x70] sm:$0xff]
      %v536 = vld [vmem:[%s229 + $0x78] sm:$0xff]
      %v537 = vld [vmem:[%s229 + $0x80] sm:$0xff]
      %v538 = vld [vmem:[%s229 + $0x88] sm:$0xff]
      %v539 = vld [vmem:[%s229 + $0x90] sm:$0xff]
      %v540 = vld [vmem:[%s229 + $0x98] sm:$0xff]
      %v541 = vld [vmem:[%s229 + $0xa0] sm:$0xff]
      %v542 = vld [vmem:[%s229 + $0xa8] sm:$0xff]
      %v543 = vld [vmem:[%s229 + $0xb0] sm:$0xff]
      %v544 = vld [vmem:[%s229 + $0xb8] sm:$0xff]
      %v545 = vld [vmem:[%s229 + $0xc0] sm:$0xff]
      %v546 = vld [vmem:[%s229 + $0xc8] sm:$0xff]
      %v547 = vld [vmem:[%s229 + $0xd0] sm:$0xff]
      %v548 = vld [vmem:[%s229 + $0xd8] sm:$0xff]
      %v549 = vld [vmem:[%s229 + $0xe0] sm:$0xff]
      %v550 = vld [vmem:[%s229 + $0xe8] sm:$0xff]
      %v551 = vld [vmem:[%s229 + $0xf0] sm:$0xff]
      %v552 = vld [vmem:[%s229 + $0xf8] sm:$0xff]
      %v553 = vld [vmem:[%s229 + $0x100] sm:$0xff]
      %v554 = vld [vmem:[%s229 + $0x108] sm:$0xff]
      %v555 = vld [vmem:[%s229 + $0x110] sm:$0xff]
      %v556 = vld [vmem:[%s229 + $0x118] sm:$0xff]
      %v557 = vld [vmem:[%s229 + $0x120] sm:$0xff]
      %v558 = vld [vmem:[%s229 + $0x128] sm:$0xff]
      %v559 = vld [vmem:[%s229 + $0x130] sm:$0xff]
      %v560 = vld [vmem:[%s229 + $0x138] sm:$0xff]
      %v561 = vld [vmem:[%s229 + $0x140] sm:$0xff]
      %v562 = vld [vmem:[%s229 + $0x148] sm:$0xff]
      %v563 = vld [vmem:[%s229 + $0x150] sm:$0xff]
      %v564 = vld [vmem:[%s229 + $0x158] sm:$0xff]
      %v565 = vld [vmem:[%s229 + $0x160] sm:$0xff]
      %v566 = vld [vmem:[%s229 + $0x168] sm:$0xff]
      %v567 = vld [vmem:[%s229 + $0x170] sm:$0xff]
      %v568 = vld [vmem:[%s229 + $0x178] sm:$0xff]
      %v569 = vld [vmem:[%s229 + $0x180] sm:$0xff]
      %v570 = vld [vmem:[%s229 + $0x188] sm:$0xff]
      %v571 = vld [vmem:[%s229 + $0x190] sm:$0xff]
      %v572 = vld [vmem:[%s229 + $0x198] sm:$0xff]
      %v573 = vld [vmem:[%s229 + $0x1a0] sm:$0xff]
      %v574 = vld [vmem:[%s229 + $0x1a8] sm:$0xff]
      %v629 = vunpack.c.l.b16 %v521
      %v630 = vunpack.c.h.b16 %v521
      %v631 = vunpack.c.l.b16 %v522
      %v632 = vunpack.c.h.b16 %v522
      %v633 = vunpack.c.l.b16 %v523
      %v634 = vunpack.c.h.b16 %v523
      %v635 = vunpack.c.l.b16 %v524
      %v636 = vunpack.c.h.b16 %v524
      %v637 = vunpack.c.l.b16 %v525
      %v638 = vunpack.c.h.b16 %v525
      %v639 = vunpack.c.l.b16 %v526
      %v640 = vunpack.c.h.b16 %v526
      %v641 = vunpack.c.l.b16 %v527
      %v642 = vunpack.c.h.b16 %v527
      %v643 = vunpack.c.l.b16 %v528
      %v644 = vunpack.c.h.b16 %v528
      %v645 = vunpack.c.l.b16 %v529
      %v646 = vunpack.c.h.b16 %v529
      %v647 = vunpack.c.l.b16 %v530
      %v648 = vunpack.c.h.b16 %v530
      %v649 = vunpack.c.l.b16 %v531
      %v650 = vunpack.c.h.b16 %v531
      %v651 = vunpack.c.l.b16 %v532
      %v652 = vunpack.c.h.b16 %v532
      %v653 = vunpack.c.l.b16 %v533
      %v654 = vunpack.c.h.b16 %v533
      %v655 = vunpack.c.l.b16 %v534
      %v656 = vunpack.c.h.b16 %v534
      %v657 = vunpack.c.l.b16 %v535
      %v658 = vunpack.c.h.b16 %v535
      %v659 = vunpack.c.l.b16 %v536
      %v660 = vunpack.c.h.b16 %v536
      %v661 = vunpack.c.l.b16 %v537
      %v662 = vunpack.c.h.b16 %v537
      %v663 = vunpack.c.l.b16 %v538
      %v664 = vunpack.c.h.b16 %v538
      %v665 = vunpack.c.l.b16 %v539
      %v666 = vunpack.c.h.b16 %v539
      %v667 = vunpack.c.l.b16 %v540
      %v668 = vunpack.c.h.b16 %v540
      %v669 = vunpack.c.l.b16 %v541
      %v670 = vunpack.c.h.b16 %v541
      %v671 = vunpack.c.l.b16 %v542
      %v672 = vunpack.c.h.b16 %v542
      %v673 = vunpack.c.l.b16 %v543
      %v674 = vunpack.c.h.b16 %v543
      %v675 = vunpack.c.l.b16 %v544
      %v676 = vunpack.c.h.b16 %v544
      %v677 = vunpack.c.l.b16 %v545
      %v678 = vunpack.c.h.b16 %v545
      %v679 = vunpack.c.l.b16 %v546
      %v680 = vunpack.c.h.b16 %v546
      %v681 = vunpack.c.l.b16 %v547
      %v682 = vunpack.c.h.b16 %v547
      %v683 = vunpack.c.l.b16 %v548
      %v684 = vunpack.c.h.b16 %v548
      %v685 = vunpack.c.l.b16 %v549
      %v686 = vunpack.c.h.b16 %v549
      %v687 = vunpack.c.l.b16 %v550
      %v688 = vunpack.c.h.b16 %v550
      %v689 = vunpack.c.l.b16 %v551
      %v690 = vunpack.c.h.b16 %v551
      %v691 = vunpack.c.l.b16 %v552
      %v692 = vunpack.c.h.b16 %v552
      %v693 = vunpack.c.l.b16 %v553
      %v694 = vunpack.c.h.b16 %v553
      %v695 = vunpack.c.l.b16 %v554
      %v696 = vunpack.c.h.b16 %v554
      %v697 = vunpack.c.l.b16 %v555
      %v698 = vunpack.c.h.b16 %v555
      %v699 = vunpack.c.l.b16 %v556
      %v700 = vunpack.c.h.b16 %v556
      %v701 = vunpack.c.l.b16 %v557
      %v702 = vunpack.c.h.b16 %v557
      %v703 = vunpack.c.l.b16 %v558
      %v704 = vunpack.c.h.b16 %v558
      %v705 = vunpack.c.l.b16 %v559
      %v706 = vunpack.c.h.b16 %v559
      %v707 = vunpack.c.l.b16 %v560
      %v708 = vunpack.c.h.b16 %v560
      %v709 = vunpack.c.l.b16 %v561
      %v710 = vunpack.c.h.b16 %v561
      %v711 = vunpack.c.l.b16 %v562
      %v712 = vunpack.c.h.b16 %v562
      %v713 = vunpack.c.l.b16 %v563
      %v714 = vunpack.c.h.b16 %v563
      %v715 = vunpack.c.l.b16 %v564
      %v716 = vunpack.c.h.b16 %v564
      %v717 = vunpack.c.l.b16 %v565
      %v718 = vunpack.c.h.b16 %v565
      %v719 = vunpack.c.l.b16 %v566
      %v720 = vunpack.c.h.b16 %v566
      %v721 = vunpack.c.l.b16 %v567
      %v722 = vunpack.c.h.b16 %v567
      %v723 = vunpack.c.l.b16 %v568
      %v724 = vunpack.c.h.b16 %v568
      %v725 = vunpack.c.l.b16 %v569
      %v726 = vunpack.c.h.b16 %v569
      %v727 = vunpack.c.l.b16 %v570
      %v728 = vunpack.c.h.b16 %v570
      %v729 = vunpack.c.l.b16 %v571
      %v730 = vunpack.c.h.b16 %v571
      %v731 = vunpack.c.l.b16 %v572
      %v732 = vunpack.c.h.b16 %v572
      %v733 = vunpack.c.l.b16 %v573
      %v734 = vunpack.c.h.b16 %v573
      %v735 = vunpack.c.l.b16 %v574
      %v736 = vunpack.c.h.b16 %v574
      %v737 = vpack.c.b16 %v633, %v629
      %v738 = vpack.c.b16 %v634, %v630
      %v739 = vpack.c.b16 %v635, %v631
      %v740 = vpack.c.b16 %v636, %v632
      %v741 = vpack.c.b16 %v641, %v637
      %v742 = vpack.c.b16 %v642, %v638
      %v743 = vpack.c.b16 %v643, %v639
      %v744 = vpack.c.b16 %v644, %v640
      %v745 = vpack.c.b16 %v649, %v645
      %v746 = vpack.c.b16 %v650, %v646
      %v747 = vpack.c.b16 %v651, %v647
      %v748 = vpack.c.b16 %v652, %v648
      %v749 = vpack.c.b16 %v657, %v653
      %v750 = vpack.c.b16 %v658, %v654
      %v751 = vpack.c.b16 %v659, %v655
      %v752 = vpack.c.b16 %v660, %v656
      %v753 = vpack.c.b16 %v665, %v661
      %v754 = vpack.c.b16 %v666, %v662
      %v755 = vpack.c.b16 %v667, %v663
      %v756 = vpack.c.b16 %v668, %v664
      %v757 = vpack.c.b16 %v673, %v669
      %v758 = vpack.c.b16 %v674, %v670
      %v759 = vpack.c.b16 %v675, %v671
      %v760 = vpack.c.b16 %v676, %v672
      %v761 = vpack.c.b16 %v681, %v677
      %v762 = vpack.c.b16 %v682, %v678
      %v763 = vpack.c.b16 %v683, %v679
      %v764 = vpack.c.b16 %v684, %v680
      %v765 = vpack.c.b16 %v689, %v685
      %v766 = vpack.c.b16 %v690, %v686
      %v767 = vpack.c.b16 %v691, %v687
      %v768 = vpack.c.b16 %v692, %v688
      %v769 = vpack.c.b16 %v697, %v693
      %v770 = vpack.c.b16 %v698, %v694
      %v771 = vpack.c.b16 %v699, %v695
      %v772 = vpack.c.b16 %v700, %v696
      %v773 = vpack.c.b16 %v705, %v701
      %v774 = vpack.c.b16 %v706, %v702
      %v775 = vpack.c.b16 %v707, %v703
      %v776 = vpack.c.b16 %v708, %v704
      %v777 = vpack.c.b16 %v713, %v709
      %v778 = vpack.c.b16 %v714, %v710
      %v779 = vpack.c.b16 %v715, %v711
      %v780 = vpack.c.b16 %v716, %v712
      %v781 = vpack.c.b16 %v721, %v717
      %v782 = vpack.c.b16 %v722, %v718
      %v783 = vpack.c.b16 %v723, %v719
      %v784 = vpack.c.b16 %v724, %v720
      %v785 = vpack.c.b16 %v729, %v725
      %v786 = vpack.c.b16 %v730, %v726
      %v787 = vpack.c.b16 %v731, %v727
      %v788 = vpack.c.b16 %v732, %v728
      %v789 = vpack.c.b16 %v733, %v733
      %v790 = vpack.c.b16 %v734, %v734
      %v791 = vpack.c.b16 %v735, %v735
      %v792 = vpack.c.b16 %v736, %v736
      %vm835 = vcmask 392192
      %v837 = vsel %vm835, %v740, 0
      %v840 = vsel %vm835, %v744, 0
      %v843 = vsel %vm835, %v748, 0
      %v846 = vsel %vm835, %v752, 0
      %v849 = vsel %vm835, %v756, 0
      %v852 = vsel %vm835, %v760, 0
      %v855 = vsel %vm835, %v764, 0
      %v858 = vsel %vm835, %v768, 0
      %v861 = vsel %vm835, %v772, 0
      %v864 = vsel %vm835, %v776, 0
      %v867 = vsel %vm835, %v780, 0
      %v870 = vsel %vm835, %v784, 0
      %v873 = vsel %vm835, %v788, 0
      %v876 = vsel %vm835, %v792, 0
      %878 = vmatprep.subr.bf16.mxu0 %v468
      %879 = vmatpush1.bf16.msra.mxu0 %v467
      %880 = vmatprep.subr.bf16.mxu0 %v470
      %881 = vmatpush1.bf16.msra.mxu0 %v469
      %882 = vmatprep.subr.bf16.mxu0 %v472
      %883 = vmatpush1.bf16.msra.mxu0 %v471
      %884 = vmatprep.subr.bf16.mxu0 %v474
      %885 = vmatpush1.bf16.msra.mxu0 %v473
      %886 = vmatprep.subr.bf16.mxu0 %v476
      %887 = vmatpush1.bf16.msra.mxu0 %v475
      %888 = vmatprep.subr.bf16.mxu0 %v478
      %889 = vmatpush1.bf16.msra.mxu0 %v477
      %890 = vmatprep.subr.bf16.mxu0 %v480
      %891 = vmatpush1.bf16.msra.mxu0 %v479
      %892 = vmatprep.subr.bf16.mxu0 %v482
      %893 = vmatpush1.bf16.msra.mxu0 %v481
      %894 = vmatprep.subr.bf16.mxu0 %v484
      %895 = vmatpush1.bf16.msra.mxu0 %v483
      %896 = vmatprep.subr.bf16.mxu0 %v486
      %897 = vmatpush1.bf16.msra.mxu0 %v485
      %898 = vmatprep.subr.bf16.mxu0 %v488
      %899 = vmatpush1.bf16.msra.mxu0 %v487
      %900 = vmatprep.subr.bf16.mxu0 %v490
      %901 = vmatpush1.bf16.msra.mxu0 %v489
      %902 = vmatprep.subr.bf16.mxu0 %v492
      %903 = vmatpush1.bf16.msra.mxu0 %v491
      %904 = vmatprep.subr.bf16.mxu0 %v494
      %905 = vmatpush1.bf16.msra.mxu0 %v493
      %906 = vmatprep.subr.bf16.mxu0 %v496
      %907 = vmatpush1.bf16.msra.mxu0 %v495
      %908 = vmatprep.subr.bf16.mxu0 %v498
      %909 = vmatpush1.bf16.msra.mxu0 %v497
      %910 = vmatprep.mubr.bf16.mxu0 %v738
      %911 = vmatmul.mubr.bf16.gmra.mrb[0].mxu0 %v737
      %v912 = vpop.f32.mrb[0].mxu0
      %v913 = vadd.f32 0.0, %v912
      %v914 = vpop.f32.mrb[0].mxu0
      %v915 = vadd.f32 0.0, %v914
      %v916 = vpop.f32.mrb[0].mxu0
      %v917 = vadd.f32 0.0, %v916
      %v918 = vpop.f32.mrb[0].mxu0
      %v919 = vadd.f32 0.0, %v918
      %920 = vmatprep.mubr.bf16.mxu0 %v742
      %921 = vmatmul.mubr.bf16.gmra.mrb[0].mxu0 %v741
      %v922 = vpop.f32.mrb[0].mxu0
      %v923 = vadd.f32 0.0, %v922
      %v924 = vpop.f32.mrb[0].mxu0
      %v925 = vadd.f32 0.0, %v924
      %v926 = vpop.f32.mrb[0].mxu0
      %v927 = vadd.f32 0.0, %v926
      %v928 = vpop.f32.mrb[0].mxu0
      %v929 = vadd.f32 0.0, %v928
      %930 = vmatprep.mubr.bf16.mxu0 %v746
      %931 = vmatmul.mubr.bf16.gmra.mrb[0].mxu0 %v745
      %v932 = vpop.f32.mrb[0].mxu0
      %v933 = vadd.f32 0.0, %v932
      %v934 = vpop.f32.mrb[0].mxu0
      %v935 = vadd.f32 0.0, %v934
      %v936 = vpop.f32.mrb[0].mxu0
      %v937 = vadd.f32 0.0, %v936
      %v938 = vpop.f32.mrb[0].mxu0
      %v939 = vadd.f32 0.0, %v938
      %940 = vmatprep.mubr.bf16.mxu0 %v750
      %941 = vmatmul.mubr.bf16.gmra.mrb[0].mxu0 %v749
      %v942 = vpop.f32.mrb[0].mxu0
      %v943 = vadd.f32 0.0, %v942
      %v944 = vpop.f32.mrb[0].mxu0
      %v945 = vadd.f32 0.0, %v944
      %v946 = vpop.f32.mrb[0].mxu0
      %v947 = vadd.f32 0.0, %v946
      %v948 = vpop.f32.mrb[0].mxu0
      %v949 = vadd.f32 0.0, %v948
      %950 = vmatprep.mubr.bf16.mxu0 %v754
      %951 = vmatmul.mubr.bf16.gmra.mrb[0].mxu0 %v753
      %v952 = vpop.f32.mrb[0].mxu0
      %v953 = vadd.f32 0.0, %v952
      %v954 = vpop.f32.mrb[0].mxu0
      %v955 = vadd.f32 0.0, %v954
      %v956 = vpop.f32.mrb[0].mxu0
      %v957 = vadd.f32 0.0, %v956
      %v958 = vpop.f32.mrb[0].mxu0
      %v959 = vadd.f32 0.0, %v958
      %960 = vmatprep.mubr.bf16.mxu0 %v758
      %961 = vmatmul.mubr.bf16.gmra.mrb[0].mxu0 %v757
      %v962 = vpop.f32.mrb[0].mxu0
      %v963 = vadd.f32 0.0, %v962
      %v964 = vpop.f32.mrb[0].mxu0
      %v965 = vadd.f32 0.0, %v964
      %v966 = vpop.f32.mrb[0].mxu0
      %v967 = vadd.f32 0.0, %v966
      %v968 = vpop.f32.mrb[0].mxu0
      %v969 = vadd.f32 0.0, %v968
      %970 = vmatprep.mubr.bf16.mxu0 %v762
      %971 = vmatmul.mubr.bf16.gmra.mrb[0].mxu0 %v761
      %v972 = vpop.f32.mrb[0].mxu0
      %v973 = vadd.f32 0.0, %v972
      %v974 = vpop.f32.mrb[0].mxu0
      %v975 = vadd.f32 0.0, %v974
      %v976 = vpop.f32.mrb[0].mxu0
      %v977 = vadd.f32 0.0, %v976
      %v978 = vpop.f32.mrb[0].mxu0
      %v979 = vadd.f32 0.0, %v978
      %980 = vmatprep.mubr.bf16.mxu0 %v766
      %981 = vmatmul.mubr.bf16.gmra.mrb[0].mxu0 %v765
      %v982 = vpop.f32.mrb[0].mxu0
      %v983 = vadd.f32 0.0, %v982
      %v984 = vpop.f32.mrb[0].mxu0
      %v985 = vadd.f32 0.0, %v984
      %v986 = vpop.f32.mrb[0].mxu0
      %v987 = vadd.f32 0.0, %v986
      %v988 = vpop.f32.mrb[0].mxu0
      %v989 = vadd.f32 0.0, %v988
      %990 = vmatprep.mubr.bf16.mxu0 %v770
      %991 = vmatmul.mubr.bf16.gmra.mrb[0].mxu0 %v769
      %v992 = vpop.f32.mrb[0].mxu0
      %v993 = vadd.f32 0.0, %v992
      %v994 = vpop.f32.mrb[0].mxu0
      %v995 = vadd.f32 0.0, %v994
      %v996 = vpop.f32.mrb[0].mxu0
      %v997 = vadd.f32 0.0, %v996
      %v998 = vpop.f32.mrb[0].mxu0
      %v999 = vadd.f32 0.0, %v998
      %1000 = vmatprep.mubr.bf16.mxu0 %v774
      %1001 = vmatmul.mubr.bf16.gmra.mrb[0].mxu0 %v773
      %v1002 = vpop.f32.mrb[0].mxu0
      %v1003 = vadd.f32 0.0, %v1002
      %v1004 = vpop.f32.mrb[0].mxu0
      %v1005 = vadd.f32 0.0, %v1004
      %v1006 = vpop.f32.mrb[0].mxu0
      %v1007 = vadd.f32 0.0, %v1006
      %v1008 = vpop.f32.mrb[0].mxu0
      %v1009 = vadd.f32 0.0, %v1008
      %1010 = vmatprep.mubr.bf16.mxu0 %v778
      %1011 = vmatmul.mubr.bf16.gmra.mrb[0].mxu0 %v777
      %v1012 = vpop.f32.mrb[0].mxu0
      %v1013 = vadd.f32 0.0, %v1012
      %v1014 = vpop.f32.mrb[0].mxu0
      %v1015 = vadd.f32 0.0, %v1014
      %v1016 = vpop.f32.mrb[0].mxu0
      %v1017 = vadd.f32 0.0, %v1016
      %v1018 = vpop.f32.mrb[0].mxu0
      %v1019 = vadd.f32 0.0, %v1018
      %1020 = vmatprep.mubr.bf16.mxu0 %v782
      %1021 = vmatmul.mubr.bf16.gmra.mrb[0].mxu0 %v781
      %v1022 = vpop.f32.mrb[0].mxu0
      %v1023 = vadd.f32 0.0, %v1022
      %v1024 = vpop.f32.mrb[0].mxu0
      %v1025 = vadd.f32 0.0, %v1024
      %v1026 = vpop.f32.mrb[0].mxu0
      %v1027 = vadd.f32 0.0, %v1026
      %v1028 = vpop.f32.mrb[0].mxu0
      %v1029 = vadd.f32 0.0, %v1028
      %1030 = vmatprep.mubr.bf16.mxu0 %v786
      %1031 = vmatmul.mubr.bf16.gmra.mrb[0].mxu0 %v785
      %v1032 = vpop.f32.mrb[0].mxu0
      %v1033 = vadd.f32 0.0, %v1032
      %v1034 = vpop.f32.mrb[0].mxu0
      %v1035 = vadd.f32 0.0, %v1034
      %v1036 = vpop.f32.mrb[0].mxu0
      %v1037 = vadd.f32 0.0, %v1036
      %v1038 = vpop.f32.mrb[0].mxu0
      %v1039 = vadd.f32 0.0, %v1038
      %1040 = vmatprep.mubr.bf16.mxu0 %v790
      %1041 = vmatmul.mubr.bf16.gmra.mrb[0].mxu0 %v789
      %v1042 = vpop.f32.mrb[0].mxu0
      %v1043 = vadd.f32 0.0, %v1042
      %v1044 = vpop.f32.mrb[0].mxu0
      %v1045 = vadd.f32 0.0, %v1044
      %v1046 = vpop.f32.mrb[0].mxu0
      %v1047 = vpop.f32.mrb[0].mxu0
      %1048 = vdwg.mxu0
      %1049 = vmatprep.subr.bf16.mxu0 %v500
      %1050 = vmatpush1.bf16.msra.mxu0 %v499
      %1051 = vmatprep.subr.bf16.mxu0 %v502
      %1052 = vmatpush1.bf16.msra.mxu0 %v501
      %1053 = vmatprep.subr.bf16.mxu0 %v504
      %1054 = vmatpush1.bf16.msra.mxu0 %v503
      %1055 = vmatprep.subr.bf16.mxu0 %v506
      %1056 = vmatpush1.bf16.msra.mxu0 %v505
      %1057 = vmatprep.subr.bf16.mxu0 %v508
      %1058 = vmatpush1.bf16.msra.mxu0 %v507
      %1059 = vmatprep.subr.bf16.mxu0 %v510
      %1060 = vmatpush1.bf16.msra.mxu0 %v509
      %1061 = vmatprep.subr.bf16.mxu0 %v512
      %1062 = vmatpush1.bf16.msra.mxu0 %v511
      %1063 = vmatprep.subr.bf16.mxu0 %v514
      %1064 = vmatpush1.bf16.msra.mxu0 %v513
      %1065 = vmatprep.subr.bf16.mxu0 %v516
      %1066 = vmatpush1.bf16.msra.mxu0 %v515
      %1067 = vmatprep.subr.bf16.mxu0 %v518
      %1068 = vmatpush1.bf16.msra.mxu0 %v517
      %1069 = vmatprep.subr.bf16.mxu0 %v520
      %1070 = vmatpush1.bf16.msra.mxu0 %v519
      %1071 = vmatprep.subr.bf16.mxu0 0
      %1072 = vmatpush1.bf16.msra.mxu0 0
      %1073 = vmatprep.subr.bf16.mxu0 0
      %1074 = vmatpush1.bf16.msra.mxu0 0
      %1075 = vmatprep.subr.bf16.mxu0 0
      %1076 = vmatpush1.bf16.msra.mxu0 0
      %1077 = vmatprep.subr.bf16.mxu0 0
      %1078 = vmatpush1.bf16.msra.mxu0 0
      %1079 = vmatprep.subr.bf16.mxu0 0
      %1080 = vmatpush1.bf16.msra.mxu0 0
      %1081 = vmatprep.mubr.bf16.mxu0 %v837
      %1082 = vmatmul.mubr.bf16.gmra.mrb[0].mxu0 %v739
      %v1083 = vpop.f32.mrb[0].mxu0
      %v1084 = vadd.f32 %v913, %v1083
      %v1085 = vpop.f32.mrb[0].mxu0
      %v1086 = vadd.f32 %v915, %v1085
      %v1087 = vpop.f32.mrb[0].mxu0
      %v1088 = vadd.f32 %v917, %v1087
      %v1089 = vpop.f32.mrb[0].mxu0
      %v1090 = vadd.f32 %v919, %v1089
      %1091 = vmatprep.mubr.bf16.mxu0 %v840
      %1092 = vmatmul.mubr.bf16.gmra.mrb[0].mxu0 %v743
      %v1093 = vpop.f32.mrb[0].mxu0
      %v1094 = vadd.f32 %v923, %v1093
      %v1095 = vpop.f32.mrb[0].mxu0
      %v1096 = vadd.f32 %v925, %v1095
      %v1097 = vpop.f32.mrb[0].mxu0
      %v1098 = vadd.f32 %v927, %v1097
      %v1099 = vpop.f32.mrb[0].mxu0
      %v1100 = vadd.f32 %v929, %v1099
      %1101 = vmatprep.mubr.bf16.mxu0 %v843
      %1102 = vmatmul.mubr.bf16.gmra.mrb[0].mxu0 %v747
      %v1103 = vpop.f32.mrb[0].mxu0
      %v1104 = vadd.f32 %v933, %v1103
      %v1105 = vpop.f32.mrb[0].mxu0
      %v1106 = vadd.f32 %v935, %v1105
      %v1107 = vpop.f32.mrb[0].mxu0
      %v1108 = vadd.f32 %v937, %v1107
      %v1109 = vpop.f32.mrb[0].mxu0
      %v1110 = vadd.f32 %v939, %v1109
      %1111 = vmatprep.mubr.bf16.mxu0 %v846
      %1112 = vmatmul.mubr.bf16.gmra.mrb[0].mxu0 %v751
      %v1113 = vpop.f32.mrb[0].mxu0
      %v1114 = vadd.f32 %v943, %v1113
      %v1115 = vpop.f32.mrb[0].mxu0
      %v1116 = vadd.f32 %v945, %v1115
      %v1117 = vpop.f32.mrb[0].mxu0
      %v1118 = vadd.f32 %v947, %v1117
      %v1119 = vpop.f32.mrb[0].mxu0
      %v1120 = vadd.f32 %v949, %v1119
      %1121 = vmatprep.mubr.bf16.mxu0 %v849
      %1122 = vmatmul.mubr.bf16.gmra.mrb[0].mxu0 %v755
      %v1123 = vpop.f32.mrb[0].mxu0
      %v1124 = vadd.f32 %v953, %v1123
      %v1125 = vpop.f32.mrb[0].mxu0
      %v1126 = vadd.f32 %v955, %v1125
      %v1127 = vpop.f32.mrb[0].mxu0
      %v1128 = vadd.f32 %v957, %v1127
      %v1129 = vpop.f32.mrb[0].mxu0
      %v1130 = vadd.f32 %v959, %v1129
      %1131 = vmatprep.mubr.bf16.mxu0 %v852
      %1132 = vmatmul.mubr.bf16.gmra.mrb[0].mxu0 %v759
      %v1133 = vpop.f32.mrb[0].mxu0
      %v1134 = vadd.f32 %v963, %v1133
      %v1135 = vpop.f32.mrb[0].mxu0
      %v1136 = vadd.f32 %v965, %v1135
      %v1137 = vpop.f32.mrb[0].mxu0
      %v1138 = vadd.f32 %v967, %v1137
      %v1139 = vpop.f32.mrb[0].mxu0
      %v1140 = vadd.f32 %v969, %v1139
      %1141 = vmatprep.mubr.bf16.mxu0 %v855
      %1142 = vmatmul.mubr.bf16.gmra.mrb[0].mxu0 %v763
      %v1143 = vpop.f32.mrb[0].mxu0
      %v1144 = vadd.f32 %v973, %v1143
      %v1145 = vpop.f32.mrb[0].mxu0
      %v1146 = vadd.f32 %v975, %v1145
      %v1147 = vpop.f32.mrb[0].mxu0
      %v1148 = vadd.f32 %v977, %v1147
      %v1149 = vpop.f32.mrb[0].mxu0
      %v1150 = vadd.f32 %v979, %v1149
      %1151 = vmatprep.mubr.bf16.mxu0 %v858
      %1152 = vmatmul.mubr.bf16.gmra.mrb[0].mxu0 %v767
      %v1153 = vpop.f32.mrb[0].mxu0
      %v1154 = vadd.f32 %v983, %v1153
      %v1155 = vpop.f32.mrb[0].mxu0
      %v1156 = vadd.f32 %v985, %v1155
      %v1157 = vpop.f32.mrb[0].mxu0
      %v1158 = vadd.f32 %v987, %v1157
      %v1159 = vpop.f32.mrb[0].mxu0
      %v1160 = vadd.f32 %v989, %v1159
      %1161 = vmatprep.mubr.bf16.mxu0 %v861
      %1162 = vmatmul.mubr.bf16.gmra.mrb[0].mxu0 %v771
      %v1163 = vpop.f32.mrb[0].mxu0
      %v1164 = vadd.f32 %v993, %v1163
      %v1165 = vpop.f32.mrb[0].mxu0
      %v1166 = vadd.f32 %v995, %v1165
      %v1167 = vpop.f32.mrb[0].mxu0
      %v1168 = vadd.f32 %v997, %v1167
      %v1169 = vpop.f32.mrb[0].mxu0
      %v1170 = vadd.f32 %v999, %v1169
      %1171 = vmatprep.mubr.bf16.mxu0 %v864
      %1172 = vmatmul.mubr.bf16.gmra.mrb[0].mxu0 %v775
      %v1173 = vpop.f32.mrb[0].mxu0
      %v1174 = vadd.f32 %v1003, %v1173
      %v1175 = vpop.f32.mrb[0].mxu0
      %v1176 = vadd.f32 %v1005, %v1175
      %v1177 = vpop.f32.mrb[0].mxu0
      %v1178 = vadd.f32 %v1007, %v1177
      %v1179 = vpop.f32.mrb[0].mxu0
      %v1180 = vadd.f32 %v1009, %v1179
      %1181 = vmatprep.mubr.bf16.mxu0 %v867
      %1182 = vmatmul.mubr.bf16.gmra.mrb[0].mxu0 %v779
      %v1183 = vpop.f32.mrb[0].mxu0
      %v1184 = vadd.f32 %v1013, %v1183
      %v1185 = vpop.f32.mrb[0].mxu0
      %v1186 = vadd.f32 %v1015, %v1185
      %v1187 = vpop.f32.mrb[0].mxu0
      %v1188 = vadd.f32 %v1017, %v1187
      %v1189 = vpop.f32.mrb[0].mxu0
      %v1190 = vadd.f32 %v1019, %v1189
      %1191 = vmatprep.mubr.bf16.mxu0 %v870
      %1192 = vmatmul.mubr.bf16.gmra.mrb[0].mxu0 %v783
      %v1193 = vpop.f32.mrb[0].mxu0
      %v1194 = vadd.f32 %v1023, %v1193
      %v1195 = vpop.f32.mrb[0].mxu0
      %v1196 = vadd.f32 %v1025, %v1195
      %v1197 = vpop.f32.mrb[0].mxu0
      %v1198 = vadd.f32 %v1027, %v1197
      %v1199 = vpop.f32.mrb[0].mxu0
      %v1200 = vadd.f32 %v1029, %v1199
      %1201 = vmatprep.mubr.bf16.mxu0 %v873
      %1202 = vmatmul.mubr.bf16.gmra.mrb[0].mxu0 %v787
      %v1203 = vpop.f32.mrb[0].mxu0
      %v1204 = vadd.f32 %v1033, %v1203
      %v1205 = vpop.f32.mrb[0].mxu0
      %v1206 = vadd.f32 %v1035, %v1205
      %v1207 = vpop.f32.mrb[0].mxu0
      %v1208 = vadd.f32 %v1037, %v1207
      %v1209 = vpop.f32.mrb[0].mxu0
      %v1210 = vadd.f32 %v1039, %v1209
      %1211 = vmatprep.mubr.bf16.mxu0 %v876
      %1212 = vmatmul.mubr.bf16.gmra.mrb[0].mxu0 %v791
      %v1213 = vpop.f32.mrb[0].mxu0
      %v1214 = vadd.f32 %v1043, %v1213
      %v1215 = vpop.f32.mrb[0].mxu0
      %v1216 = vadd.f32 %v1045, %v1215
      %v1217 = vpop.f32.mrb[0].mxu0
      %v1218 = vpop.f32.mrb[0].mxu0
      %1219 = vdwg.mxu0
      %vm1220 = vcmask 556032
      %v1222 = vsel %vm1220, %v1086, 0
      %v1225 = vsel %vm1220, %v1090, 0
      %v1228 = vsel %vm1220, %v1096, 0
      %v1231 = vsel %vm1220, %v1100, 0
      %v1234 = vsel %vm1220, %v1106, 0
      %v1237 = vsel %vm1220, %v1110, 0
      %v1240 = vsel %vm1220, %v1116, 0
      %v1243 = vsel %vm1220, %v1120, 0
      %v1246 = vsel %vm1220, %v1126, 0
      %v1249 = vsel %vm1220, %v1130, 0
      %v1252 = vsel %vm1220, %v1136, 0
      %v1255 = vsel %vm1220, %v1140, 0
      %v1258 = vsel %vm1220, %v1146, 0
      %v1261 = vsel %vm1220, %v1150, 0
      %v1264 = vsel %vm1220, %v1156, 0
      %v1267 = vsel %vm1220, %v1160, 0
      %v1270 = vsel %vm1220, %v1166, 0
      %v1273 = vsel %vm1220, %v1170, 0
      %v1276 = vsel %vm1220, %v1176, 0
      %v1279 = vsel %vm1220, %v1180, 0
      %v1282 = vsel %vm1220, %v1186, 0
      %v1285 = vsel %vm1220, %v1190, 0
      %v1288 = vsel %vm1220, %v1196, 0
      %v1291 = vsel %vm1220, %v1200, 0
      %v1294 = vsel %vm1220, %v1206, 0
      %v1297 = vsel %vm1220, %v1210, 0
      %v1300 = vsel %vm1220, %v1216, 0
      %vm1302 = vcmask 1043456
      %v1304 = vsel %vm1302, 1.0, 0
      %1306 = vmatprep.subr.mxu0 0.0
      %1307 = vmatpush1.msra.mxu0 1.0
      %1308 = vmatprep.subr.mxu0 0.0
      %1309 = vmatpush1.msra.mxu0 1.0
      %1310 = vmatprep.subr.mxu0 0.0
      %1311 = vmatpush1.msra.mxu0 1.0
      %1312 = vmatprep.subr.mxu0 0.0
      %1313 = vmatpush1.msra.mxu0 1.0
      %1314 = vmatprep.subr.mxu0 0.0
      %1315 = vmatpush1.msra.mxu0 1.0
      %1316 = vmatprep.subr.mxu0 0.0
      %1317 = vmatpush1.msra.mxu0 1.0
      %1318 = vmatprep.subr.mxu0 0.0
      %1319 = vmatpush1.msra.mxu0 1.0
      %1320 = vmatprep.subr.mxu0 0.0
      %1321 = vmatpush1.msra.mxu0 1.0
      %1322 = vmatprep.subr.mxu0 0.0
      %1323 = vmatpush1.msra.mxu0 1.0
      %1324 = vmatprep.subr.mxu0 0.0
      %1325 = vmatpush1.msra.mxu0 1.0
      %1326 = vmatprep.subr.mxu0 0.0
      %1327 = vmatpush1.msra.mxu0 1.0
      %1328 = vmatprep.subr.mxu0 0.0
      %1329 = vmatpush1.msra.mxu0 1.0
      %1330 = vmatprep.subr.mxu0 0.0
      %1331 = vmatpush1.msra.mxu0 1.0
      %1332 = vmatprep.subr.mxu0 0.0
      %1333 = vmatpush1.msra.mxu0 1.0
      %1334 = vmatprep.subr.mxu0 0.0
      %1335 = vmatpush1.msra.mxu0 1.0
      %1336 = vmatprep.subr.mxu0 0.0
      %1337 = vmatpush1.msra.mxu0 1.0
      %1338 = vmatprep.subr.mxu0 0.0
      %1339 = vmatpush1.msra.mxu0 1.0
      %1340 = vmatprep.subr.mxu0 0.0
      %1341 = vmatpush1.msra.mxu0 1.0
      %1342 = vmatprep.subr.mxu0 0.0
      %1343 = vmatpush1.msra.mxu0 1.0
      %1344 = vmatprep.subr.mxu0 0.0
      %1345 = vmatpush1.msra.mxu0 1.0
      %1346 = vmatprep.subr.mxu0 0.0
      %1347 = vmatpush1.msra.mxu0 1.0
      %1348 = vmatprep.subr.mxu0 0.0
      %1349 = vmatpush1.msra.mxu0 1.0
      %1350 = vmatprep.subr.mxu0 0.0
      %1351 = vmatpush1.msra.mxu0 1.0
      %1352 = vmatprep.subr.mxu0 0.0
      %1353 = vmatpush1.msra.mxu0 1.0
      %1354 = vmatprep.subr.mxu0 0.0
      %1355 = vmatpush1.msra.mxu0 %v1304
      %1356 = vmatprep.subr.mxu0 0.0
      %1357 = vmatpush1.msra.mxu0 0.0
      %1358 = vmatprep.subr.mxu0 0.0
      %1359 = vmatpush1.msra.mxu0 0.0
      %1360 = vmatprep.subr.mxu0 0.0
      %1361 = vmatpush1.msra.mxu0 0.0
      %1362 = vmatprep.subr.mxu0 0.0
      %1363 = vmatpush1.msra.mxu0 0.0
      %1364 = vmatprep.subr.mxu0 0.0
      %1365 = vmatpush1.msra.mxu0 0.0
      %1366 = vmatprep.subr.mxu0 0.0
      %1367 = vmatpush1.msra.mxu0 0.0
      %1368 = vmatprep.subr.mxu0 0.0
      %1369 = vmatpush1.msra.mxu0 0.0
      %1370 = vmatprep.mubr.f32.mxu0 %v1222
      %1371 = vmatmul.mubr.f32.gmra.mrb[0].mxu0 %v1084
      %v1372 = vpop.f32.mrb[0].mxu0
      %v1373 = vadd.f32 0.0, %v1372
      %v1374 = vpop.f32.mrb[0].mxu0
      %1375 = vmatprep.mubr.f32.mxu0 %v1225
      %1376 = vmatmul.mubr.f32.gmra.mrb[0].mxu0 %v1088
      %v1377 = vpop.f32.mrb[0].mxu0
      %v1378 = vadd.f32 0.0, %v1377
      %v1379 = vpop.f32.mrb[0].mxu0
      %1380 = vmatprep.mubr.f32.mxu0 %v1228
      %1381 = vmatmul.mubr.f32.gmra.mrb[0].mxu0 %v1094
      %v1382 = vpop.f32.mrb[0].mxu0
      %v1383 = vadd.f32 0.0, %v1382
      %v1384 = vpop.f32.mrb[0].mxu0
      %1385 = vmatprep.mubr.f32.mxu0 %v1231
      %1386 = vmatmul.mubr.f32.gmra.mrb[0].mxu0 %v1098
      %v1387 = vpop.f32.mrb[0].mxu0
      %v1388 = vadd.f32 0.0, %v1387
      %v1389 = vpop.f32.mrb[0].mxu0
      %1390 = vmatprep.mubr.f32.mxu0 %v1234
      %1391 = vmatmul.mubr.f32.gmra.mrb[0].mxu0 %v1104
      %v1392 = vpop.f32.mrb[0].mxu0
      %v1393 = vadd.f32 0.0, %v1392
      %v1394 = vpop.f32.mrb[0].mxu0
      %1395 = vmatprep.mubr.f32.mxu0 %v1237
      %1396 = vmatmul.mubr.f32.gmra.mrb[0].mxu0 %v1108
      %v1397 = vpop.f32.mrb[0].mxu0
      %v1398 = vadd.f32 0.0, %v1397
      %v1399 = vpop.f32.mrb[0].mxu0
      %1400 = vmatprep.mubr.f32.mxu0 %v1240
      %1401 = vmatmul.mubr.f32.gmra.mrb[0].mxu0 %v1114
      %v1402 = vpop.f32.mrb[0].mxu0
      %v1403 = vadd.f32 0.0, %v1402
      %v1404 = vpop.f32.mrb[0].mxu0
      %1405 = vmatprep.mubr.f32.mxu0 %v1243
      %1406 = vmatmul.mubr.f32.gmra.mrb[0].mxu0 %v1118
      %v1407 = vpop.f32.mrb[0].mxu0
      %v1408 = vadd.f32 0.0, %v1407
      %v1409 = vpop.f32.mrb[0].mxu0
      %1410 = vmatprep.mubr.f32.mxu0 %v1246
      %1411 = vmatmul.mubr.f32.gmra.mrb[0].mxu0 %v1124
      %v1412 = vpop.f32.mrb[0].mxu0
      %v1413 = vadd.f32 0.0, %v1412
      %v1414 = vpop.f32.mrb[0].mxu0
      %1415 = vmatprep.mubr.f32.mxu0 %v1249
      %1416 = vmatmul.mubr.f32.gmra.mrb[0].mxu0 %v1128
      %v1417 = vpop.f32.mrb[0].mxu0
      %v1418 = vadd.f32 0.0, %v1417
      %v1419 = vpop.f32.mrb[0].mxu0
      %1420 = vmatprep.mubr.f32.mxu0 %v1252
      %1421 = vmatmul.mubr.f32.gmra.mrb[0].mxu0 %v1134
      %v1422 = vpop.f32.mrb[0].mxu0
      %v1423 = vadd.f32 0.0, %v1422
      %v1424 = vpop.f32.mrb[0].mxu0
      %1425 = vmatprep.mubr.f32.mxu0 %v1255
      %1426 = vmatmul.mubr.f32.gmra.mrb[0].mxu0 %v1138
      %v1427 = vpop.f32.mrb[0].mxu0
      %v1428 = vadd.f32 0.0, %v1427
      %v1429 = vpop.f32.mrb[0].mxu0
      %1430 = vmatprep.mubr.f32.mxu0 %v1258
      %1431 = vmatmul.mubr.f32.gmra.mrb[0].mxu0 %v1144
      %v1432 = vpop.f32.mrb[0].mxu0
      %v1433 = vadd.f32 0.0, %v1432
      %v1434 = vpop.f32.mrb[0].mxu0
      %1435 = vmatprep.mubr.f32.mxu0 %v1261
      %1436 = vmatmul.mubr.f32.gmra.mrb[0].mxu0 %v1148
      %v1437 = vpop.f32.mrb[0].mxu0
      %v1438 = vadd.f32 0.0, %v1437
      %v1439 = vpop.f32.mrb[0].mxu0
      %1440 = vmatprep.mubr.f32.mxu0 %v1264
      %1441 = vmatmul.mubr.f32.gmra.mrb[0].mxu0 %v1154
      %v1442 = vpop.f32.mrb[0].mxu0
      %v1443 = vadd.f32 0.0, %v1442
      %v1444 = vpop.f32.mrb[0].mxu0
      %1445 = vmatprep.mubr.f32.mxu0 %v1267
      %1446 = vmatmul.mubr.f32.gmra.mrb[0].mxu0 %v1158
      %v1447 = vpop.f32.mrb[0].mxu0
      %v1448 = vadd.f32 0.0, %v1447
      %v1449 = vpop.f32.mrb[0].mxu0
      %1450 = vmatprep.mubr.f32.mxu0 %v1270
      %1451 = vmatmul.mubr.f32.gmra.mrb[0].mxu0 %v1164
      %v1452 = vpop.f32.mrb[0].mxu0
      %v1453 = vadd.f32 0.0, %v1452
      %v1454 = vpop.f32.mrb[0].mxu0
      %1455 = vmatprep.mubr.f32.mxu0 %v1273
      %1456 = vmatmul.mubr.f32.gmra.mrb[0].mxu0 %v1168
      %v1457 = vpop.f32.mrb[0].mxu0
      %v1458 = vadd.f32 0.0, %v1457
      %v1459 = vpop.f32.mrb[0].mxu0
      %1460 = vmatprep.mubr.f32.mxu0 %v1276
      %1461 = vmatmul.mubr.f32.gmra.mrb[0].mxu0 %v1174
      %v1462 = vpop.f32.mrb[0].mxu0
      %v1463 = vadd.f32 0.0, %v1462
      %v1464 = vpop.f32.mrb[0].mxu0
      %1465 = vmatprep.mubr.f32.mxu0 %v1279
      %1466 = vmatmul.mubr.f32.gmra.mrb[0].mxu0 %v1178
      %v1467 = vpop.f32.mrb[0].mxu0
      %v1468 = vadd.f32 0.0, %v1467
      %v1469 = vpop.f32.mrb[0].mxu0
      %1470 = vmatprep.mubr.f32.mxu0 %v1282
      %1471 = vmatmul.mubr.f32.gmra.mrb[0].mxu0 %v1184
      %v1472 = vpop.f32.mrb[0].mxu0
      %v1473 = vadd.f32 0.0, %v1472
      %v1474 = vpop.f32.mrb[0].mxu0
      %1475 = vmatprep.mubr.f32.mxu0 %v1285
      %1476 = vmatmul.mubr.f32.gmra.mrb[0].mxu0 %v1188
      %v1477 = vpop.f32.mrb[0].mxu0
      %v1478 = vadd.f32 0.0, %v1477
      %v1479 = vpop.f32.mrb[0].mxu0
      %1480 = vmatprep.mubr.f32.mxu0 %v1288
      %1481 = vmatmul.mubr.f32.gmra.mrb[0].mxu0 %v1194
      %v1482 = vpop.f32.mrb[0].mxu0
      %v1483 = vadd.f32 0.0, %v1482
      %v1484 = vpop.f32.mrb[0].mxu0
      %1485 = vmatprep.mubr.f32.mxu0 %v1291
      %1486 = vmatmul.mubr.f32.gmra.mrb[0].mxu0 %v1198
      %v1487 = vpop.f32.mrb[0].mxu0
      %v1488 = vadd.f32 0.0, %v1487
      %v1489 = vpop.f32.mrb[0].mxu0
      %1490 = vmatprep.mubr.f32.mxu0 %v1294
      %1491 = vmatmul.mubr.f32.gmra.mrb[0].mxu0 %v1204
      %v1492 = vpop.f32.mrb[0].mxu0
      %v1493 = vadd.f32 0.0, %v1492
      %v1494 = vpop.f32.mrb[0].mxu0
      %1495 = vmatprep.mubr.f32.mxu0 %v1297
      %1496 = vmatmul.mubr.f32.gmra.mrb[0].mxu0 %v1208
      %v1497 = vpop.f32.mrb[0].mxu0
      %v1498 = vadd.f32 0.0, %v1497
      %v1499 = vpop.f32.mrb[0].mxu0
      %1500 = vmatprep.mubr.f32.mxu0 %v1300
      %1501 = vmatmul.mubr.f32.gmra.mrb[0].mxu0 %v1214
      %v1502 = vpop.f32.mrb[0].mxu0
      %v1503 = vadd.f32 0.0, %v1502
      %v1504 = vpop.f32.mrb[0].mxu0
      %1505 = vdwg.mxu0
      %v1506 = vmul.f32 %v1084, %v1084
      %v1507 = vmul.f32 %v1086, %v1086
      %v1508 = vmul.f32 %v1088, %v1088
      %v1509 = vmul.f32 %v1090, %v1090
      %v1510 = vmul.f32 %v1094, %v1094
      %v1511 = vmul.f32 %v1096, %v1096
      %v1512 = vmul.f32 %v1098, %v1098
      %v1513 = vmul.f32 %v1100, %v1100
      %v1514 = vmul.f32 %v1104, %v1104
      %v1515 = vmul.f32 %v1106, %v1106
      %v1516 = vmul.f32 %v1108, %v1108
      %v1517 = vmul.f32 %v1110, %v1110
      %v1518 = vmul.f32 %v1114, %v1114
      %v1519 = vmul.f32 %v1116, %v1116
      %v1520 = vmul.f32 %v1118, %v1118
      %v1521 = vmul.f32 %v1120, %v1120
      %v1522 = vmul.f32 %v1124, %v1124
      %v1523 = vmul.f32 %v1126, %v1126
      %v1524 = vmul.f32 %v1128, %v1128
      %v1525 = vmul.f32 %v1130, %v1130
      %v1526 = vmul.f32 %v1134, %v1134
      %v1527 = vmul.f32 %v1136, %v1136
      %v1528 = vmul.f32 %v1138, %v1138
      %v1529 = vmul.f32 %v1140, %v1140
      %v1530 = vmul.f32 %v1144, %v1144
      %v1531 = vmul.f32 %v1146, %v1146
      %v1532 = vmul.f32 %v1148, %v1148
      %v1533 = vmul.f32 %v1150, %v1150
      %v1534 = vmul.f32 %v1154, %v1154
      %v1535 = vmul.f32 %v1156, %v1156
      %v1536 = vmul.f32 %v1158, %v1158
      %v1537 = vmul.f32 %v1160, %v1160
      %v1538 = vmul.f32 %v1164, %v1164
      %v1539 = vmul.f32 %v1166, %v1166
      %v1540 = vmul.f32 %v1168, %v1168
      %v1541 = vmul.f32 %v1170, %v1170
      %v1542 = vmul.f32 %v1174, %v1174
      %v1543 = vmul.f32 %v1176, %v1176
      %v1544 = vmul.f32 %v1178, %v1178
      %v1545 = vmul.f32 %v1180, %v1180
      %v1546 = vmul.f32 %v1184, %v1184
      %v1547 = vmul.f32 %v1186, %v1186
      %v1548 = vmul.f32 %v1188, %v1188
      %v1549 = vmul.f32 %v1190, %v1190
      %v1550 = vmul.f32 %v1194, %v1194
      %v1551 = vmul.f32 %v1196, %v1196
      %v1552 = vmul.f32 %v1198, %v1198
      %v1553 = vmul.f32 %v1200, %v1200
      %v1554 = vmul.f32 %v1204, %v1204
      %v1555 = vmul.f32 %v1206, %v1206
      %v1556 = vmul.f32 %v1208, %v1208
      %v1557 = vmul.f32 %v1210, %v1210
      %v1558 = vmul.f32 %v1214, %v1214
      %v1559 = vmul.f32 %v1216, %v1216
      %v1560 = vsel %vm1220, %v1507, 0.0
      %v1561 = vadd.f32 %v1506, %v1560
      %1562 = vadd.xlane.f32.xlu0 %v1561
      %v1563 = vpop.xlane.xlu0 %1562
      %v1564 = vsel %vm1220, %v1509, 0.0
      %v1565 = vadd.f32 %v1508, %v1564
      %1566 = vadd.xlane.f32.xlu0 %v1565
      %v1567 = vpop.xlane.xlu0 %1566
      %v1568 = vsel %vm1220, %v1511, 0.0
      %v1569 = vadd.f32 %v1510, %v1568
      %1570 = vadd.xlane.f32.xlu0 %v1569
      %v1571 = vpop.xlane.xlu0 %1570
      %v1572 = vsel %vm1220, %v1513, 0.0
      %v1573 = vadd.f32 %v1512, %v1572
      %1574 = vadd.xlane.f32.xlu0 %v1573
      %v1575 = vpop.xlane.xlu0 %1574
      %v1576 = vsel %vm1220, %v1515, 0.0
      %v1577 = vadd.f32 %v1514, %v1576
      %1578 = vadd.xlane.f32.xlu0 %v1577
      %v1579 = vpop.xlane.xlu0 %1578
      %v1580 = vsel %vm1220, %v1517, 0.0
      %v1581 = vadd.f32 %v1516, %v1580
      %1582 = vadd.xlane.f32.xlu0 %v1581
      %v1583 = vpop.xlane.xlu0 %1582
      %v1584 = vsel %vm1220, %v1519, 0.0
      %v1585 = vadd.f32 %v1518, %v1584
      %1586 = vadd.xlane.f32.xlu0 %v1585
      %v1587 = vpop.xlane.xlu0 %1586
      %v1588 = vsel %vm1220, %v1521, 0.0
      %v1589 = vadd.f32 %v1520, %v1588
      %1590 = vadd.xlane.f32.xlu0 %v1589
      %v1591 = vpop.xlane.xlu0 %1590
      %v1592 = vsel %vm1220, %v1523, 0.0
      %v1593 = vadd.f32 %v1522, %v1592
      %1594 = vadd.xlane.f32.xlu0 %v1593
      %v1595 = vpop.xlane.xlu0 %1594
      %v1596 = vsel %vm1220, %v1525, 0.0
      %v1597 = vadd.f32 %v1524, %v1596
      %1598 = vadd.xlane.f32.xlu0 %v1597
      %v1599 = vpop.xlane.xlu0 %1598
      %v1600 = vsel %vm1220, %v1527, 0.0
      %v1601 = vadd.f32 %v1526, %v1600
      %1602 = vadd.xlane.f32.xlu0 %v1601
      %v1603 = vpop.xlane.xlu0 %1602
      %v1604 = vsel %vm1220, %v1529, 0.0
      %v1605 = vadd.f32 %v1528, %v1604
      %1606 = vadd.xlane.f32.xlu0 %v1605
      %v1607 = vpop.xlane.xlu0 %1606
      %v1608 = vsel %vm1220, %v1531, 0.0
      %v1609 = vadd.f32 %v1530, %v1608
      %1610 = vadd.xlane.f32.xlu0 %v1609
      %v1611 = vpop.xlane.xlu0 %1610
      %v1612 = vsel %vm1220, %v1533, 0.0
      %v1613 = vadd.f32 %v1532, %v1612
      %1614 = vadd.xlane.f32.xlu0 %v1613
      %v1615 = vpop.xlane.xlu0 %1614
      %v1616 = vsel %vm1220, %v1535, 0.0
      %v1617 = vadd.f32 %v1534, %v1616
      %1618 = vadd.xlane.f32.xlu0 %v1617
      %v1619 = vpop.xlane.xlu0 %1618
      %v1620 = vsel %vm1220, %v1537, 0.0
      %v1621 = vadd.f32 %v1536, %v1620
      %1622 = vadd.xlane.f32.xlu0 %v1621
      %v1623 = vpop.xlane.xlu0 %1622
      %v1624 = vsel %vm1220, %v1539, 0.0
      %v1625 = vadd.f32 %v1538, %v1624
      %1626 = vadd.xlane.f32.xlu0 %v1625
      %v1627 = vpop.xlane.xlu0 %1626
      %v1628 = vsel %vm1220, %v1541, 0.0
      %v1629 = vadd.f32 %v1540, %v1628
      %1630 = vadd.xlane.f32.xlu0 %v1629
      %v1631 = vpop.xlane.xlu0 %1630
      %v1632 = vsel %vm1220, %v1543, 0.0
      %v1633 = vadd.f32 %v1542, %v1632
      %1634 = vadd.xlane.f32.xlu0 %v1633
      %v1635 = vpop.xlane.xlu0 %1634
      %v1636 = vsel %vm1220, %v1545, 0.0
      %v1637 = vadd.f32 %v1544, %v1636
      %1638 = vadd.xlane.f32.xlu0 %v1637
      %v1639 = vpop.xlane.xlu0 %1638
      %v1640 = vsel %vm1220, %v1547, 0.0
      %v1641 = vadd.f32 %v1546, %v1640
      %1642 = vadd.xlane.f32.xlu0 %v1641
      %v1643 = vpop.xlane.xlu0 %1642
      %v1644 = vsel %vm1220, %v1549, 0.0
      %v1645 = vadd.f32 %v1548, %v1644
      %1646 = vadd.xlane.f32.xlu0 %v1645
      %v1647 = vpop.xlane.xlu0 %1646
      %v1648 = vsel %vm1220, %v1551, 0.0
      %v1649 = vadd.f32 %v1550, %v1648
      %1650 = vadd.xlane.f32.xlu0 %v1649
      %v1651 = vpop.xlane.xlu0 %1650
      %v1652 = vsel %vm1220, %v1553, 0.0
      %v1653 = vadd.f32 %v1552, %v1652
      %1654 = vadd.xlane.f32.xlu0 %v1653
      %v1655 = vpop.xlane.xlu0 %1654
      %v1656 = vsel %vm1220, %v1555, 0.0
      %v1657 = vadd.f32 %v1554, %v1656
      %1658 = vadd.xlane.f32.xlu0 %v1657
      %v1659 = vpop.xlane.xlu0 %1658
      %v1660 = vsel %vm1220, %v1557, 0.0
      %v1661 = vadd.f32 %v1556, %v1660
      %1662 = vadd.xlane.f32.xlu0 %v1661
      %v1663 = vpop.xlane.xlu0 %1662
      %v1664 = vsel %vm1220, %v1559, 0.0
      %v1665 = vadd.f32 %v1558, %v1664
      %1666 = vadd.xlane.f32.xlu0 %v1665
      %v1667 = vpop.xlane.xlu0 %1666
      %v1668 = vmul.f32 %v1373, 0.0051020407
      %v1669 = vmul.f32 %v1378, 0.0051020407
      %v1670 = vmul.f32 %v1383, 0.0051020407
      %v1671 = vmul.f32 %v1388, 0.0051020407
      %v1672 = vmul.f32 %v1393, 0.0051020407
      %v1673 = vmul.f32 %v1398, 0.0051020407
      %v1674 = vmul.f32 %v1403, 0.0051020407
      %v1675 = vmul.f32 %v1408, 0.0051020407
      %v1676 = vmul.f32 %v1413, 0.0051020407
      %v1677 = vmul.f32 %v1418, 0.0051020407
      %v1678 = vmul.f32 %v1423, 0.0051020407
      %v1679 = vmul.f32 %v1428, 0.0051020407
      %v1680 = vmul.f32 %v1433, 0.0051020407
      %v1681 = vmul.f32 %v1438, 0.0051020407
      %v1682 = vmul.f32 %v1443, 0.0051020407
      %v1683 = vmul.f32 %v1448, 0.0051020407
      %v1684 = vmul.f32 %v1453, 0.0051020407
      %v1685 = vmul.f32 %v1458, 0.0051020407
      %v1686 = vmul.f32 %v1463, 0.0051020407
      %v1687 = vmul.f32 %v1468, 0.0051020407
      %v1688 = vmul.f32 %v1473, 0.0051020407
      %v1689 = vmul.f32 %v1478, 0.0051020407
      %v1690 = vmul.f32 %v1483, 0.0051020407
      %v1691 = vmul.f32 %v1488, 0.0051020407
      %v1692 = vmul.f32 %v1493, 0.0051020407
      %v1693 = vmul.f32 %v1498, 0.0051020407
      %v1694 = vmul.f32 %v1503, 0.0051020407
      %v1695 = vmul.f32 %v1563, 0.0051020407
      %v1696 = vmul.f32 %v1567, 0.0051020407
      %v1697 = vmul.f32 %v1571, 0.0051020407
      %v1698 = vmul.f32 %v1575, 0.0051020407
      %v1699 = vmul.f32 %v1579, 0.0051020407
      %v1700 = vmul.f32 %v1583, 0.0051020407
      %v1701 = vmul.f32 %v1587, 0.0051020407
      %v1702 = vmul.f32 %v1591, 0.0051020407
      %v1703 = vmul.f32 %v1595, 0.0051020407
      %v1704 = vmul.f32 %v1599, 0.0051020407
      %v1705 = vmul.f32 %v1603, 0.0051020407
      %v1706 = vmul.f32 %v1607, 0.0051020407
      %v1707 = vmul.f32 %v1611, 0.0051020407
      %v1708 = vmul.f32 %v1615, 0.0051020407
      %v1709 = vmul.f32 %v1619, 0.0051020407
      %v1710 = vmul.f32 %v1623, 0.0051020407
      %v1711 = vmul.f32 %v1627, 0.0051020407
      %v1712 = vmul.f32 %v1631, 0.0051020407
      %v1713 = vmul.f32 %v1635, 0.0051020407
      %v1714 = vmul.f32 %v1639, 0.0051020407
      %v1715 = vmul.f32 %v1643, 0.0051020407
      %v1716 = vmul.f32 %v1647, 0.0051020407
      %v1717 = vmul.f32 %v1651, 0.0051020407
      %v1718 = vmul.f32 %v1655, 0.0051020407
      %v1719 = vmul.f32 %v1659, 0.0051020407
      %v1720 = vmul.f32 %v1663, 0.0051020407
      %v1721 = vmul.f32 %v1667, 0.0051020407
      %v1722 = vmul.f32 %v1668, %v1668
      %v1723 = vmul.f32 %v1669, %v1669
      %v1724 = vmul.f32 %v1670, %v1670
      %v1725 = vmul.f32 %v1671, %v1671
      %v1726 = vmul.f32 %v1672, %v1672
      %v1727 = vmul.f32 %v1673, %v1673
      %v1728 = vmul.f32 %v1674, %v1674
      %v1729 = vmul.f32 %v1675, %v1675
      %v1730 = vmul.f32 %v1676, %v1676
      %v1731 = vmul.f32 %v1677, %v1677
      %v1732 = vmul.f32 %v1678, %v1678
      %v1733 = vmul.f32 %v1679, %v1679
      %v1734 = vmul.f32 %v1680, %v1680
      %v1735 = vmul.f32 %v1681, %v1681
      %v1736 = vmul.f32 %v1682, %v1682
      %v1737 = vmul.f32 %v1683, %v1683
      %v1738 = vmul.f32 %v1684, %v1684
      %v1739 = vmul.f32 %v1685, %v1685
      %v1740 = vmul.f32 %v1686, %v1686
      %v1741 = vmul.f32 %v1687, %v1687
      %v1742 = vmul.f32 %v1688, %v1688
      %v1743 = vmul.f32 %v1689, %v1689
      %v1744 = vmul.f32 %v1690, %v1690
      %v1745 = vmul.f32 %v1691, %v1691
      %v1746 = vmul.f32 %v1692, %v1692
      %v1747 = vmul.f32 %v1693, %v1693
      %v1748 = vmul.f32 %v1694, %v1694
      %v1749 = vsub.f32 %v1695, %v1722
      %v1750 = vsub.f32 %v1696, %v1723
      %v1751 = vsub.f32 %v1697, %v1724
      %v1752 = vsub.f32 %v1698, %v1725
      %v1753 = vsub.f32 %v1699, %v1726
      %v1754 = vsub.f32 %v1700, %v1727
      %v1755 = vsub.f32 %v1701, %v1728
      %v1756 = vsub.f32 %v1702, %v1729
      %v1757 = vsub.f32 %v1703, %v1730
      %v1758 = vsub.f32 %v1704, %v1731
      %v1759 = vsub.f32 %v1705, %v1732
      %v1760 = vsub.f32 %v1706, %v1733
      %v1761 = vsub.f32 %v1707, %v1734
      %v1762 = vsub.f32 %v1708, %v1735
      %v1763 = vsub.f32 %v1709, %v1736
      %v1764 = vsub.f32 %v1710, %v1737
      %v1765 = vsub.f32 %v1711, %v1738
      %v1766 = vsub.f32 %v1712, %v1739
      %v1767 = vsub.f32 %v1713, %v1740
      %v1768 = vsub.f32 %v1714, %v1741
      %v1769 = vsub.f32 %v1715, %v1742
      %v1770 = vsub.f32 %v1716, %v1743
      %v1771 = vsub.f32 %v1717, %v1744
      %v1772 = vsub.f32 %v1718, %v1745
      %v1773 = vsub.f32 %v1719, %v1746
      %v1774 = vsub.f32 %v1720, %v1747
      %v1775 = vsub.f32 %v1721, %v1748
      %v1776 = vmax.f32 %v1749, 0.0
      %v1777 = vmax.f32 %v1750, 0.0
      %v1778 = vmax.f32 %v1751, 0.0
      %v1779 = vmax.f32 %v1752, 0.0
      %v1780 = vmax.f32 %v1753, 0.0
      %v1781 = vmax.f32 %v1754, 0.0
      %v1782 = vmax.f32 %v1755, 0.0
      %v1783 = vmax.f32 %v1756, 0.0
      %v1784 = vmax.f32 %v1757, 0.0
      %v1785 = vmax.f32 %v1758, 0.0
      %v1786 = vmax.f32 %v1759, 0.0
      %v1787 = vmax.f32 %v1760, 0.0
      %v1788 = vmax.f32 %v1761, 0.0
      %v1789 = vmax.f32 %v1762, 0.0
      %v1790 = vmax.f32 %v1763, 0.0
      %v1791 = vmax.f32 %v1764, 0.0
      %v1792 = vmax.f32 %v1765, 0.0
      %v1793 = vmax.f32 %v1766, 0.0
      %v1794 = vmax.f32 %v1767, 0.0
      %v1795 = vmax.f32 %v1768, 0.0
      %v1796 = vmax.f32 %v1769, 0.0
      %v1797 = vmax.f32 %v1770, 0.0
      %v1798 = vmax.f32 %v1771, 0.0
      %v1799 = vmax.f32 %v1772, 0.0
      %v1800 = vmax.f32 %v1773, 0.0
      %v1801 = vmax.f32 %v1774, 0.0
      %v1802 = vmax.f32 %v1775, 0.0
      %v1803 = vadd.f32 %v1776, 1e-05
      %v1804 = vadd.f32 %v1777, 1e-05
      %v1805 = vadd.f32 %v1778, 1e-05
      %v1806 = vadd.f32 %v1779, 1e-05
      %v1807 = vadd.f32 %v1780, 1e-05
      %v1808 = vadd.f32 %v1781, 1e-05
      %v1809 = vadd.f32 %v1782, 1e-05
      %v1810 = vadd.f32 %v1783, 1e-05
      %v1811 = vadd.f32 %v1784, 1e-05
      %v1812 = vadd.f32 %v1785, 1e-05
      %v1813 = vadd.f32 %v1786, 1e-05
      %v1814 = vadd.f32 %v1787, 1e-05
      %v1815 = vadd.f32 %v1788, 1e-05
      %v1816 = vadd.f32 %v1789, 1e-05
      %v1817 = vadd.f32 %v1790, 1e-05
      %v1818 = vadd.f32 %v1791, 1e-05
      %v1819 = vadd.f32 %v1792, 1e-05
      %v1820 = vadd.f32 %v1793, 1e-05
      %v1821 = vadd.f32 %v1794, 1e-05
      %v1822 = vadd.f32 %v1795, 1e-05
      %v1823 = vadd.f32 %v1796, 1e-05
      %v1824 = vadd.f32 %v1797, 1e-05
      %v1825 = vadd.f32 %v1798, 1e-05
      %v1826 = vadd.f32 %v1799, 1e-05
      %v1827 = vadd.f32 %v1800, 1e-05
      %v1828 = vadd.f32 %v1801, 1e-05
      %v1829 = vadd.f32 %v1802, 1e-05
      %v1830 = vrsqrt.pop %v1803
      %v1831 = vrsqrt.pop %v1804
      %v1832 = vrsqrt.pop %v1805
      %v1833 = vrsqrt.pop %v1806
      %v1834 = vrsqrt.pop %v1807
      %v1835 = vrsqrt.pop %v1808
      %v1836 = vrsqrt.pop %v1809
      %v1837 = vrsqrt.pop %v1810
      %v1838 = vrsqrt.pop %v1811
      %v1839 = vrsqrt.pop %v1812
      %v1840 = vrsqrt.pop %v1813
      %v1841 = vrsqrt.pop %v1814
      %v1842 = vrsqrt.pop %v1815
      %v1843 = vrsqrt.pop %v1816
      %v1844 = vrsqrt.pop %v1817
      %v1845 = vrsqrt.pop %v1818
      %v1846 = vrsqrt.pop %v1819
      %v1847 = vrsqrt.pop %v1820
      %v1848 = vrsqrt.pop %v1821
      %v1849 = vrsqrt.pop %v1822
      %v1850 = vrsqrt.pop %v1823
      %v1851 = vrsqrt.pop %v1824
      %v1852 = vrsqrt.pop %v1825
      %v1853 = vrsqrt.pop %v1826
      %v1854 = vrsqrt.pop %v1827
      %v1855 = vrsqrt.pop %v1828
      %v1856 = vrsqrt.pop %v1829
      %v1857 = vld [vmem:[%s235] sm:$0xff]
      %v1858 = vld [vmem:[%s235 + $0x8] sm:$0xff]
      %v1859 = vld [vmem:[%s235 + $0x10] sm:$0xff]
      %v1860 = vld [vmem:[%s235 + $0x18] sm:$0xff]
      %v1861 = vld [vmem:[%s235 + $0x20] sm:$0xff]
      %v1862 = vld [vmem:[%s235 + $0x28] sm:$0xff]
      %v1863 = vld [vmem:[%s235 + $0x30] sm:$0xff]
      %v1864 = vld [vmem:[%s235 + $0x38] sm:$0xff]
      %v1865 = vld [vmem:[%s235 + $0x40] sm:$0xff]
      %v1866 = vld [vmem:[%s235 + $0x48] sm:$0xff]
      %v1867 = vld [vmem:[%s235 + $0x50] sm:$0xff]
      %v1868 = vld [vmem:[%s235 + $0x58] sm:$0xff]
      %v1869 = vld [vmem:[%s235 + $0x60] sm:$0xff]
      %v1870 = vld [vmem:[%s235 + $0x68] sm:$0xff]
      %v1871 = vld [vmem:[%s235 + $0x70] sm:$0xff]
      %v1872 = vld [vmem:[%s235 + $0x78] sm:$0xff]
      %v1873 = vld [vmem:[%s235 + $0x80] sm:$0xff]
      %v1874 = vld [vmem:[%s235 + $0x88] sm:$0xff]
      %v1875 = vld [vmem:[%s235 + $0x90] sm:$0xff]
      %v1876 = vld [vmem:[%s235 + $0x98] sm:$0xff]
      %v1877 = vld [vmem:[%s235 + $0xa0] sm:$0xff]
      %v1878 = vld [vmem:[%s235 + $0xa8] sm:$0xff]
      %v1879 = vld [vmem:[%s235 + $0xb0] sm:$0xff]
      %v1880 = vld [vmem:[%s235 + $0xb8] sm:$0xff]
      %v1881 = vld [vmem:[%s235 + $0xc0] sm:$0xff]
      %v1882 = vld [vmem:[%s235 + $0xc8] sm:$0xff]
      %v1883 = vld [vmem:[%s235 + $0xd0] sm:$0xff]
      %v1884 = vmul.f32 %v1857, %v1830
      %v1885 = vmul.f32 %v1858, %v1831
      %v1886 = vmul.f32 %v1859, %v1832
      %v1887 = vmul.f32 %v1860, %v1833
      %v1888 = vmul.f32 %v1861, %v1834
      %v1889 = vmul.f32 %v1862, %v1835
      %v1890 = vmul.f32 %v1863, %v1836
      %v1891 = vmul.f32 %v1864, %v1837
      %v1892 = vmul.f32 %v1865, %v1838
      %v1893 = vmul.f32 %v1866, %v1839
      %v1894 = vmul.f32 %v1867, %v1840
      %v1895 = vmul.f32 %v1868, %v1841
      %v1896 = vmul.f32 %v1869, %v1842
      %v1897 = vmul.f32 %v1870, %v1843
      %v1898 = vmul.f32 %v1871, %v1844
      %v1899 = vmul.f32 %v1872, %v1845
      %v1900 = vmul.f32 %v1873, %v1846
      %v1901 = vmul.f32 %v1874, %v1847
      %v1902 = vmul.f32 %v1875, %v1848
      %v1903 = vmul.f32 %v1876, %v1849
      %v1904 = vmul.f32 %v1877, %v1850
      %v1905 = vmul.f32 %v1878, %v1851
      %v1906 = vmul.f32 %v1879, %v1852
      %v1907 = vmul.f32 %v1880, %v1853
      %v1908 = vmul.f32 %v1881, %v1854
      %v1909 = vmul.f32 %v1882, %v1855
      %v1910 = vmul.f32 %v1883, %v1856
      %v1911 = vld [vmem:[%s241] sm:$0xff]
      %v1912 = vld [vmem:[%s241 + $0x8] sm:$0xff]
      %v1913 = vld [vmem:[%s241 + $0x10] sm:$0xff]
      %v1914 = vld [vmem:[%s241 + $0x18] sm:$0xff]
      %v1915 = vld [vmem:[%s241 + $0x20] sm:$0xff]
      %v1916 = vld [vmem:[%s241 + $0x28] sm:$0xff]
      %v1917 = vld [vmem:[%s241 + $0x30] sm:$0xff]
      %v1918 = vld [vmem:[%s241 + $0x38] sm:$0xff]
      %v1919 = vld [vmem:[%s241 + $0x40] sm:$0xff]
      %v1920 = vld [vmem:[%s241 + $0x48] sm:$0xff]
      %v1921 = vld [vmem:[%s241 + $0x50] sm:$0xff]
      %v1922 = vld [vmem:[%s241 + $0x58] sm:$0xff]
      %v1923 = vld [vmem:[%s241 + $0x60] sm:$0xff]
      %v1924 = vld [vmem:[%s241 + $0x68] sm:$0xff]
      %v1925 = vld [vmem:[%s241 + $0x70] sm:$0xff]
      %v1926 = vld [vmem:[%s241 + $0x78] sm:$0xff]
      %v1927 = vld [vmem:[%s241 + $0x80] sm:$0xff]
      %v1928 = vld [vmem:[%s241 + $0x88] sm:$0xff]
      %v1929 = vld [vmem:[%s241 + $0x90] sm:$0xff]
      %v1930 = vld [vmem:[%s241 + $0x98] sm:$0xff]
      %v1931 = vld [vmem:[%s241 + $0xa0] sm:$0xff]
      %v1932 = vld [vmem:[%s241 + $0xa8] sm:$0xff]
      %v1933 = vld [vmem:[%s241 + $0xb0] sm:$0xff]
      %v1934 = vld [vmem:[%s241 + $0xb8] sm:$0xff]
      %v1935 = vld [vmem:[%s241 + $0xc0] sm:$0xff]
      %v1936 = vld [vmem:[%s241 + $0xc8] sm:$0xff]
      %v1937 = vld [vmem:[%s241 + $0xd0] sm:$0xff]
      %v1938 = vmul.f32 %v1668, %v1884
      %v1939 = vmul.f32 %v1669, %v1885
      %v1940 = vmul.f32 %v1670, %v1886
      %v1941 = vmul.f32 %v1671, %v1887
      %v1942 = vmul.f32 %v1672, %v1888
      %v1943 = vmul.f32 %v1673, %v1889
      %v1944 = vmul.f32 %v1674, %v1890
      %v1945 = vmul.f32 %v1675, %v1891
      %v1946 = vmul.f32 %v1676, %v1892
      %v1947 = vmul.f32 %v1677, %v1893
      %v1948 = vmul.f32 %v1678, %v1894
      %v1949 = vmul.f32 %v1679, %v1895
      %v1950 = vmul.f32 %v1680, %v1896
      %v1951 = vmul.f32 %v1681, %v1897
      %v1952 = vmul.f32 %v1682, %v1898
      %v1953 = vmul.f32 %v1683, %v1899
      %v1954 = vmul.f32 %v1684, %v1900
      %v1955 = vmul.f32 %v1685, %v1901
      %v1956 = vmul.f32 %v1686, %v1902
      %v1957 = vmul.f32 %v1687, %v1903
      %v1958 = vmul.f32 %v1688, %v1904
      %v1959 = vmul.f32 %v1689, %v1905
      %v1960 = vmul.f32 %v1690, %v1906
      %v1961 = vmul.f32 %v1691, %v1907
      %v1962 = vmul.f32 %v1692, %v1908
      %v1963 = vmul.f32 %v1693, %v1909
      %v1964 = vmul.f32 %v1694, %v1910
      %v1965 = vsub.f32 %v1911, %v1938
      %v1966 = vsub.f32 %v1912, %v1939
      %v1967 = vsub.f32 %v1913, %v1940
      %v1968 = vsub.f32 %v1914, %v1941
      %v1969 = vsub.f32 %v1915, %v1942
      %v1970 = vsub.f32 %v1916, %v1943
      %v1971 = vsub.f32 %v1917, %v1944
      %v1972 = vsub.f32 %v1918, %v1945
      %v1973 = vsub.f32 %v1919, %v1946
      %v1974 = vsub.f32 %v1920, %v1947
      %v1975 = vsub.f32 %v1921, %v1948
      %v1976 = vsub.f32 %v1922, %v1949
      %v1977 = vsub.f32 %v1923, %v1950
      %v1978 = vsub.f32 %v1924, %v1951
      %v1979 = vsub.f32 %v1925, %v1952
      %v1980 = vsub.f32 %v1926, %v1953
      %v1981 = vsub.f32 %v1927, %v1954
      %v1982 = vsub.f32 %v1928, %v1955
      %v1983 = vsub.f32 %v1929, %v1956
      %v1984 = vsub.f32 %v1930, %v1957
      %v1985 = vsub.f32 %v1931, %v1958
      %v1986 = vsub.f32 %v1932, %v1959
      %v1987 = vsub.f32 %v1933, %v1960
      %v1988 = vsub.f32 %v1934, %v1961
      %v1989 = vsub.f32 %v1935, %v1962
      %v1990 = vsub.f32 %v1936, %v1963
      %v1991 = vsub.f32 %v1937, %v1964
      %1993 = vset.pattern.permute.xlu0 0
      %1994 = vperm.xlu0 %1993, %v1884
      %v1995 = vpop.permute.xlu0 %1994
      %1998 = vset.pattern.permute.xlu0 0
      %1999 = vperm.xlu0 %1998, %v1885
      %v2000 = vpop.permute.xlu0 %1999
      %2003 = vset.pattern.permute.xlu0 0
      %2004 = vperm.xlu0 %2003, %v1886
      %v2005 = vpop.permute.xlu0 %2004
      %2008 = vset.pattern.permute.xlu0 0
      %2009 = vperm.xlu0 %2008, %v1887
      %v2010 = vpop.permute.xlu0 %2009
      %2013 = vset.pattern.permute.xlu0 0
      %2014 = vperm.xlu0 %2013, %v1888
      %v2015 = vpop.permute.xlu0 %2014
      %2018 = vset.pattern.permute.xlu0 0
      %2019 = vperm.xlu0 %2018, %v1889
      %v2020 = vpop.permute.xlu0 %2019
      %2023 = vset.pattern.permute.xlu0 0
      %2024 = vperm.xlu0 %2023, %v1890
      %v2025 = vpop.permute.xlu0 %2024
      %2028 = vset.pattern.permute.xlu0 0
      %2029 = vperm.xlu0 %2028, %v1891
      %v2030 = vpop.permute.xlu0 %2029
      %2033 = vset.pattern.permute.xlu0 0
      %2034 = vperm.xlu0 %2033, %v1892
      %v2035 = vpop.permute.xlu0 %2034
      %2038 = vset.pattern.permute.xlu0 0
      %2039 = vperm.xlu0 %2038, %v1893
      %v2040 = vpop.permute.xlu0 %2039
      %2043 = vset.pattern.permute.xlu0 0
      %2044 = vperm.xlu0 %2043, %v1894
      %v2045 = vpop.permute.xlu0 %2044
      %2048 = vset.pattern.permute.xlu0 0
      %2049 = vperm.xlu0 %2048, %v1895
      %v2050 = vpop.permute.xlu0 %2049
      %2053 = vset.pattern.permute.xlu0 0
      %2054 = vperm.xlu0 %2053, %v1896
      %v2055 = vpop.permute.xlu0 %2054
      %2058 = vset.pattern.permute.xlu0 0
      %2059 = vperm.xlu0 %2058, %v1897
      %v2060 = vpop.permute.xlu0 %2059
      %2063 = vset.pattern.permute.xlu0 0
      %2064 = vperm.xlu0 %2063, %v1898
      %v2065 = vpop.permute.xlu0 %2064
      %2068 = vset.pattern.permute.xlu0 0
      %2069 = vperm.xlu0 %2068, %v1899
      %v2070 = vpop.permute.xlu0 %2069
      %2073 = vset.pattern.permute.xlu0 0
      %2074 = vperm.xlu0 %2073, %v1900
      %v2075 = vpop.permute.xlu0 %2074
      %2078 = vset.pattern.permute.xlu0 0
      %2079 = vperm.xlu0 %2078, %v1901
      %v2080 = vpop.permute.xlu0 %2079
      %2083 = vset.pattern.permute.xlu0 0
      %2084 = vperm.xlu0 %2083, %v1902
      %v2085 = vpop.permute.xlu0 %2084
      %2088 = vset.pattern.permute.xlu0 0
      %2089 = vperm.xlu0 %2088, %v1903
      %v2090 = vpop.permute.xlu0 %2089
      %2093 = vset.pattern.permute.xlu0 0
      %2094 = vperm.xlu0 %2093, %v1904
      %v2095 = vpop.permute.xlu0 %2094
      %2098 = vset.pattern.permute.xlu0 0
      %2099 = vperm.xlu0 %2098, %v1905
      %v2100 = vpop.permute.xlu0 %2099
      %2103 = vset.pattern.permute.xlu0 0
      %2104 = vperm.xlu0 %2103, %v1906
      %v2105 = vpop.permute.xlu0 %2104
      %2108 = vset.pattern.permute.xlu0 0
      %2109 = vperm.xlu0 %2108, %v1907
      %v2110 = vpop.permute.xlu0 %2109
      %2113 = vset.pattern.permute.xlu0 0
      %2114 = vperm.xlu0 %2113, %v1908
      %v2115 = vpop.permute.xlu0 %2114
      %2118 = vset.pattern.permute.xlu0 0
      %2119 = vperm.xlu0 %2118, %v1909
      %v2120 = vpop.permute.xlu0 %2119
      %2123 = vset.pattern.permute.xlu0 0
      %2124 = vperm.xlu0 %2123, %v1910
      %v2125 = vpop.permute.xlu0 %2124
      %v2127 = vmul.f32 %v1084, %v1995
      %v2128 = vmul.f32 %v1086, %v1995
      %v2129 = vmul.f32 %v1088, %v2000
      %v2130 = vmul.f32 %v1090, %v2000
      %v2131 = vmul.f32 %v1094, %v2005
      %v2132 = vmul.f32 %v1096, %v2005
      %v2133 = vmul.f32 %v1098, %v2010
      %v2134 = vmul.f32 %v1100, %v2010
      %v2135 = vmul.f32 %v1104, %v2015
      %v2136 = vmul.f32 %v1106, %v2015
      %v2137 = vmul.f32 %v1108, %v2020
      %v2138 = vmul.f32 %v1110, %v2020
      %v2139 = vmul.f32 %v1114, %v2025
      %v2140 = vmul.f32 %v1116, %v2025
      %v2141 = vmul.f32 %v1118, %v2030
      %v2142 = vmul.f32 %v1120, %v2030
      %v2143 = vmul.f32 %v1124, %v2035
      %v2144 = vmul.f32 %v1126, %v2035
      %v2145 = vmul.f32 %v1128, %v2040
      %v2146 = vmul.f32 %v1130, %v2040
      %v2147 = vmul.f32 %v1134, %v2045
      %v2148 = vmul.f32 %v1136, %v2045
      %v2149 = vmul.f32 %v1138, %v2050
      %v2150 = vmul.f32 %v1140, %v2050
      %v2151 = vmul.f32 %v1144, %v2055
      %v2152 = vmul.f32 %v1146, %v2055
      %v2153 = vmul.f32 %v1148, %v2060
      %v2154 = vmul.f32 %v1150, %v2060
      %v2155 = vmul.f32 %v1154, %v2065
      %v2156 = vmul.f32 %v1156, %v2065
      %v2157 = vmul.f32 %v1158, %v2070
      %v2158 = vmul.f32 %v1160, %v2070
      %v2159 = vmul.f32 %v1164, %v2075
      %v2160 = vmul.f32 %v1166, %v2075
      %v2161 = vmul.f32 %v1168, %v2080
      %v2162 = vmul.f32 %v1170, %v2080
      %v2163 = vmul.f32 %v1174, %v2085
      %v2164 = vmul.f32 %v1176, %v2085
      %v2165 = vmul.f32 %v1178, %v2090
      %v2166 = vmul.f32 %v1180, %v2090
      %v2167 = vmul.f32 %v1184, %v2095
      %v2168 = vmul.f32 %v1186, %v2095
      %v2169 = vmul.f32 %v1188, %v2100
      %v2170 = vmul.f32 %v1190, %v2100
      %v2171 = vmul.f32 %v1194, %v2105
      %v2172 = vmul.f32 %v1196, %v2105
      %v2173 = vmul.f32 %v1198, %v2110
      %v2174 = vmul.f32 %v1200, %v2110
      %v2175 = vmul.f32 %v1204, %v2115
      %v2176 = vmul.f32 %v1206, %v2115
      %v2177 = vmul.f32 %v1208, %v2120
      %v2178 = vmul.f32 %v1210, %v2120
      %v2179 = vmul.f32 %v1214, %v2125
      %v2180 = vmul.f32 %v1216, %v2125
      %2182 = vset.pattern.permute.xlu0 0
      %2183 = vperm.xlu0 %2182, %v1965
      %v2184 = vpop.permute.xlu0 %2183
      %2187 = vset.pattern.permute.xlu0 0
      %2188 = vperm.xlu0 %2187, %v1966
      %v2189 = vpop.permute.xlu0 %2188
      %2192 = vset.pattern.permute.xlu0 0
      %2193 = vperm.xlu0 %2192, %v1967
      %v2194 = vpop.permute.xlu0 %2193
      %2197 = vset.pattern.permute.xlu0 0
      %2198 = vperm.xlu0 %2197, %v1968
      %v2199 = vpop.permute.xlu0 %2198
      %2202 = vset.pattern.permute.xlu0 0
      %2203 = vperm.xlu0 %2202, %v1969
      %v2204 = vpop.permute.xlu0 %2203
      %2207 = vset.pattern.permute.xlu0 0
      %2208 = vperm.xlu0 %2207, %v1970
      %v2209 = vpop.permute.xlu0 %2208
      %2212 = vset.pattern.permute.xlu0 0
      %2213 = vperm.xlu0 %2212, %v1971
      %v2214 = vpop.permute.xlu0 %2213
      %2217 = vset.pattern.permute.xlu0 0
      %2218 = vperm.xlu0 %2217, %v1972
      %v2219 = vpop.permute.xlu0 %2218
      %2222 = vset.pattern.permute.xlu0 0
      %2223 = vperm.xlu0 %2222, %v1973
      %v2224 = vpop.permute.xlu0 %2223
      %2227 = vset.pattern.permute.xlu0 0
      %2228 = vperm.xlu0 %2227, %v1974
      %v2229 = vpop.permute.xlu0 %2228
      %2232 = vset.pattern.permute.xlu0 0
      %2233 = vperm.xlu0 %2232, %v1975
      %v2234 = vpop.permute.xlu0 %2233
      %2237 = vset.pattern.permute.xlu0 0
      %2238 = vperm.xlu0 %2237, %v1976
      %v2239 = vpop.permute.xlu0 %2238
      %2242 = vset.pattern.permute.xlu0 0
      %2243 = vperm.xlu0 %2242, %v1977
      %v2244 = vpop.permute.xlu0 %2243
      %2247 = vset.pattern.permute.xlu0 0
      %2248 = vperm.xlu0 %2247, %v1978
      %v2249 = vpop.permute.xlu0 %2248
      %2252 = vset.pattern.permute.xlu0 0
      %2253 = vperm.xlu0 %2252, %v1979
      %v2254 = vpop.permute.xlu0 %2253
      %2257 = vset.pattern.permute.xlu0 0
      %2258 = vperm.xlu0 %2257, %v1980
      %v2259 = vpop.permute.xlu0 %2258
      %2262 = vset.pattern.permute.xlu0 0
      %2263 = vperm.xlu0 %2262, %v1981
      %v2264 = vpop.permute.xlu0 %2263
      %2267 = vset.pattern.permute.xlu0 0
      %2268 = vperm.xlu0 %2267, %v1982
      %v2269 = vpop.permute.xlu0 %2268
      %2272 = vset.pattern.permute.xlu0 0
      %2273 = vperm.xlu0 %2272, %v1983
      %v2274 = vpop.permute.xlu0 %2273
      %2277 = vset.pattern.permute.xlu0 0
      %2278 = vperm.xlu0 %2277, %v1984
      %v2279 = vpop.permute.xlu0 %2278
      %2282 = vset.pattern.permute.xlu0 0
      %2283 = vperm.xlu0 %2282, %v1985
      %v2284 = vpop.permute.xlu0 %2283
      %2287 = vset.pattern.permute.xlu0 0
      %2288 = vperm.xlu0 %2287, %v1986
      %v2289 = vpop.permute.xlu0 %2288
      %2292 = vset.pattern.permute.xlu0 0
      %2293 = vperm.xlu0 %2292, %v1987
      %v2294 = vpop.permute.xlu0 %2293
      %2297 = vset.pattern.permute.xlu0 0
      %2298 = vperm.xlu0 %2297, %v1988
      %v2299 = vpop.permute.xlu0 %2298
      %2302 = vset.pattern.permute.xlu0 0
      %2303 = vperm.xlu0 %2302, %v1989
      %v2304 = vpop.permute.xlu0 %2303
      %2307 = vset.pattern.permute.xlu0 0
      %2308 = vperm.xlu0 %2307, %v1990
      %v2309 = vpop.permute.xlu0 %2308
      %2312 = vset.pattern.permute.xlu0 0
      %2313 = vperm.xlu0 %2312, %v1991
      %v2314 = vpop.permute.xlu0 %2313
      %v2316 = vadd.f32 %v2127, %v2184
      %v2317 = vadd.f32 %v2128, %v2184
      %v2318 = vadd.f32 %v2129, %v2189
      %v2319 = vadd.f32 %v2130, %v2189
      %v2320 = vadd.f32 %v2131, %v2194
      %v2321 = vadd.f32 %v2132, %v2194
      %v2322 = vadd.f32 %v2133, %v2199
      %v2323 = vadd.f32 %v2134, %v2199
      %v2324 = vadd.f32 %v2135, %v2204
      %v2325 = vadd.f32 %v2136, %v2204
      %v2326 = vadd.f32 %v2137, %v2209
      %v2327 = vadd.f32 %v2138, %v2209
      %v2328 = vadd.f32 %v2139, %v2214
      %v2329 = vadd.f32 %v2140, %v2214
      %v2330 = vadd.f32 %v2141, %v2219
      %v2331 = vadd.f32 %v2142, %v2219
      %v2332 = vadd.f32 %v2143, %v2224
      %v2333 = vadd.f32 %v2144, %v2224
      %v2334 = vadd.f32 %v2145, %v2229
      %v2335 = vadd.f32 %v2146, %v2229
      %v2336 = vadd.f32 %v2147, %v2234
      %v2337 = vadd.f32 %v2148, %v2234
      %v2338 = vadd.f32 %v2149, %v2239
      %v2339 = vadd.f32 %v2150, %v2239
      %v2340 = vadd.f32 %v2151, %v2244
      %v2341 = vadd.f32 %v2152, %v2244
      %v2342 = vadd.f32 %v2153, %v2249
      %v2343 = vadd.f32 %v2154, %v2249
      %v2344 = vadd.f32 %v2155, %v2254
      %v2345 = vadd.f32 %v2156, %v2254
      %v2346 = vadd.f32 %v2157, %v2259
      %v2347 = vadd.f32 %v2158, %v2259
      %v2348 = vadd.f32 %v2159, %v2264
      %v2349 = vadd.f32 %v2160, %v2264
      %v2350 = vadd.f32 %v2161, %v2269
      %v2351 = vadd.f32 %v2162, %v2269
      %v2352 = vadd.f32 %v2163, %v2274
      %v2353 = vadd.f32 %v2164, %v2274
      %v2354 = vadd.f32 %v2165, %v2279
      %v2355 = vadd.f32 %v2166, %v2279
      %v2356 = vadd.f32 %v2167, %v2284
      %v2357 = vadd.f32 %v2168, %v2284
      %v2358 = vadd.f32 %v2169, %v2289
      %v2359 = vadd.f32 %v2170, %v2289
      %v2360 = vadd.f32 %v2171, %v2294
      %v2361 = vadd.f32 %v2172, %v2294
      %v2362 = vadd.f32 %v2173, %v2299
      %v2363 = vadd.f32 %v2174, %v2299
      %v2364 = vadd.f32 %v2175, %v2304
      %v2365 = vadd.f32 %v2176, %v2304
      %v2366 = vadd.f32 %v2177, %v2309
      %v2367 = vadd.f32 %v2178, %v2309
      %v2368 = vadd.f32 %v2179, %v2314
      %v2369 = vadd.f32 %v2180, %v2314
      %2370 = vst [vmem:[%s248] sm:$0xff] %v2316
      %2371 = vst.msk [vmem:[%s248 + $0x8] sm:$0xff] %vm1220, %v2317
      %2372 = vst [vmem:[%s248 + $0x10] sm:$0xff] %v2318
      %2373 = vst.msk [vmem:[%s248 + $0x18] sm:$0xff] %vm1220, %v2319
      %2374 = vst [vmem:[%s248 + $0x20] sm:$0xff] %v2320
      %2375 = vst.msk [vmem:[%s248 + $0x28] sm:$0xff] %vm1220, %v2321
      %2376 = vst [vmem:[%s248 + $0x30] sm:$0xff] %v2322
      %2377 = vst.msk [vmem:[%s248 + $0x38] sm:$0xff] %vm1220, %v2323
      %2378 = vst [vmem:[%s248 + $0x40] sm:$0xff] %v2324
      %2379 = vst.msk [vmem:[%s248 + $0x48] sm:$0xff] %vm1220, %v2325
      %2380 = vst [vmem:[%s248 + $0x50] sm:$0xff] %v2326
      %2381 = vst.msk [vmem:[%s248 + $0x58] sm:$0xff] %vm1220, %v2327
      %2382 = vst [vmem:[%s248 + $0x60] sm:$0xff] %v2328
      %2383 = vst.msk [vmem:[%s248 + $0x68] sm:$0xff] %vm1220, %v2329
      %2384 = vst [vmem:[%s248 + $0x70] sm:$0xff] %v2330
      %2385 = vst.msk [vmem:[%s248 + $0x78] sm:$0xff] %vm1220, %v2331
      %2386 = vst [vmem:[%s248 + $0x80] sm:$0xff] %v2332
      %2387 = vst.msk [vmem:[%s248 + $0x88] sm:$0xff] %vm1220, %v2333
      %2388 = vst [vmem:[%s248 + $0x90] sm:$0xff] %v2334
      %2389 = vst.msk [vmem:[%s248 + $0x98] sm:$0xff] %vm1220, %v2335
      %2390 = vst [vmem:[%s248 + $0xa0] sm:$0xff] %v2336
      %2391 = vst.msk [vmem:[%s248 + $0xa8] sm:$0xff] %vm1220, %v2337
      %2392 = vst [vmem:[%s248 + $0xb0] sm:$0xff] %v2338
      %2393 = vst.msk [vmem:[%s248 + $0xb8] sm:$0xff] %vm1220, %v2339
      %2394 = vst [vmem:[%s248 + $0xc0] sm:$0xff] %v2340
      %2395 = vst.msk [vmem:[%s248 + $0xc8] sm:$0xff] %vm1220, %v2341
      %2396 = vst [vmem:[%s248 + $0xd0] sm:$0xff] %v2342
      %2397 = vst.msk [vmem:[%s248 + $0xd8] sm:$0xff] %vm1220, %v2343
      %2398 = vst [vmem:[%s248 + $0xe0] sm:$0xff] %v2344
      %2399 = vst.msk [vmem:[%s248 + $0xe8] sm:$0xff] %vm1220, %v2345
      %2400 = vst [vmem:[%s248 + $0xf0] sm:$0xff] %v2346
      %2401 = vst.msk [vmem:[%s248 + $0xf8] sm:$0xff] %vm1220, %v2347
      %2402 = vst [vmem:[%s248 + $0x100] sm:$0xff] %v2348
      %2403 = vst.msk [vmem:[%s248 + $0x108] sm:$0xff] %vm1220, %v2349
      %2404 = vst [vmem:[%s248 + $0x110] sm:$0xff] %v2350
      %2405 = vst.msk [vmem:[%s248 + $0x118] sm:$0xff] %vm1220, %v2351
      %2406 = vst [vmem:[%s248 + $0x120] sm:$0xff] %v2352
      %2407 = vst.msk [vmem:[%s248 + $0x128] sm:$0xff] %vm1220, %v2353
      %2408 = vst [vmem:[%s248 + $0x130] sm:$0xff] %v2354
      %2409 = vst.msk [vmem:[%s248 + $0x138] sm:$0xff] %vm1220, %v2355
      %2410 = vst [vmem:[%s248 + $0x140] sm:$0xff] %v2356
      %2411 = vst.msk [vmem:[%s248 + $0x148] sm:$0xff] %vm1220, %v2357
      %2412 = vst [vmem:[%s248 + $0x150] sm:$0xff] %v2358
      %2413 = vst.msk [vmem:[%s248 + $0x158] sm:$0xff] %vm1220, %v2359
      %2414 = vst [vmem:[%s248 + $0x160] sm:$0xff] %v2360
      %2415 = vst.msk [vmem:[%s248 + $0x168] sm:$0xff] %vm1220, %v2361
      %2416 = vst [vmem:[%s248 + $0x170] sm:$0xff] %v2362
      %2417 = vst.msk [vmem:[%s248 + $0x178] sm:$0xff] %vm1220, %v2363
      %2418 = vst [vmem:[%s248 + $0x180] sm:$0xff] %v2364
      %2419 = vst.msk [vmem:[%s248 + $0x188] sm:$0xff] %vm1220, %v2365
      %2420 = vst [vmem:[%s248 + $0x190] sm:$0xff] %v2366
      %2421 = vst.msk [vmem:[%s248 + $0x198] sm:$0xff] %vm1220, %v2367
      %2422 = vst [vmem:[%s248 + $0x1a0] sm:$0xff] %v2368
      %2423 = vst.msk [vmem:[%s248 + $0x1a8] sm:$0xff] %vm1220, %v2369
      %s2424 = smul.u32 27, %s15
      %p2425 = scmp.lt.s32.totalorder %s2424, 53
      %s2426 = scalar_select %p2425, %s2424, 53
      %s2427 = smul.addr %s2426, 2
      %s2428 = smul.addr %s2427, 8
      %s2429 = scalar_lea.vmem %s4, %s2428
      // Predicated region
      $region37: #{tpu_custom_call.1} parent=35 // pred_check
        %p2430 = pneg %p132
      $region38: #{tpu_custom_call.1} parent=35 // pred_check_branch
        %2432 = sbr.rel (%p2430) target = $region40
      $region39: #{tpu_custom_call.1} parent=35 // pred_region
        %s2433 = smul.u32 27, %s15
      $region40: #{tpu_custom_call.1} parent=35 // pred_fallthru
        _
    $region36: #{tpu_custom_call.1} parent=5 // pred_fallthru
      _
    %p2434 = scmp.le.s32.totalorder 2, %s10
    // Predicated region
    $region41: #{tpu_custom_call.1} parent=5 // pred_check
      %p2435 = pneg %p2434
    $region42: #{tpu_custom_call.1} parent=5 // pred_check_branch
      %2437 = sbr.rel (%p2435) target = $region44
    $region43: #{tpu_custom_call.1} parent=5 // pred_region
      %s2438 = ssub.s32 %s10, 2
      // Predicated region
      $region45: #{tpu_custom_call.1} parent=43 // pred_check
        %p2439 = pneg %p138
      $region46: #{tpu_custom_call.1} parent=43 // pred_check_branch
        %2441 = sbr.rel (%p2439) target = $region48
      $region47: #{tpu_custom_call.1} parent=43 // pred_region
        %s2442 = smul.u32 27, %s16
        %p2443 = scmp.lt.s32.totalorder %s2442, 53
        %s2444 = scalar_select %p2443, %s2442, 53
        %s2445 = smul.addr %s2444, 2
        %s2446 = smul.addr %s2445, 8
        %s2447 = scalar_lea.vmem %s4, %s2446
      $region48: #{tpu_custom_call.1} parent=43 // pred_fallthru
        _
    $region44: #{tpu_custom_call.1} parent=5 // pred_fallthru
      _
  $region6: #{tpu_custom_call.1} parent=0 // loop_footer
    %s14 = sadd.s32 1, %s10
  $region7: #{tpu_custom_call.1} parent=0 // loop_footer_branch
    %9 = sbr.rel target = $region3
  $region8: #{tpu_custom_call.1} parent=0 // loop_exit
    _

</llo_original>
